<compile_context>
chip_gen: v7x
topology: tpu7x:2x2x1
jax: 0.10.0
libtpu: 0.0.40
codegen_flags: <defaults>
</compile_context>

<pallas_src>
import functools

import jax
import jax.numpy as jnp
from jax import lax
from jax.experimental import pallas as pl
from jax.experimental.pallas import tpu as pltpu

EPS = 1e-5        # PyTorch BatchNorm2d default eps
_GUARD = 16       # zeroed guard rows around the h1 scratch (bf16 sublane pack)


# ------------------------------ fused kernel --------------------------------

def _bottleneck_kernel(xc_ref, xt_ref, xb_ref,
                       w1_ref, s1_ref, b1_ref,
                       w2_ref, s2_ref, b2_ref,
                       w3_ref, s3_ref, b3_ref,
                       o_ref, h1_ref, slab_ref,
                       *, tm, W, planes, n_ht):
    G = _GUARD
    i = pl.program_id(1)                       # H-tile index

    xt = xt_ref[0]                             # (W, Cin)  bf16  top-halo image row
    xc = xc_ref[0]                             # (tm, Cin) bf16  center tile (also residual)
    xb = xb_ref[0]                             # (W, Cin)  bf16  bottom-halo image row

    # ---- stage 1: conv1 (1x1) + bn1 + relu, one matmul over halo+center+halo
    x_all = jnp.concatenate([xt, xc, xb], axis=0)                  # (tm+2W, Cin)
    h1 = jnp.dot(x_all, w1_ref[...], preferred_element_type=jnp.float32)
    h1 = jnp.maximum(h1 * s1_ref[...] + b1_ref[...], 0.0).astype(jnp.bfloat16)

    zeros_g = jnp.zeros((G, planes), jnp.bfloat16)
    zeros_w = jnp.zeros((W, planes), jnp.bfloat16)
    # guard rows (keeps any stale-VMEM NaNs out of the shifted tap windows)
    h1_ref[0:G, :] = zeros_g
    h1_ref[G + tm + 2 * W:G + tm + 2 * W + G, :] = zeros_g
    # halo rows are real data only for interior tiles; else SAME zero-padding
    h1_ref[G:G + W, :] = jnp.where(i > 0, h1[0:W], zeros_w)
    h1_ref[G + W:G + W + tm, :] = h1[W:W + tm]
    h1_ref[G + W + tm:G + 2 * W + tm, :] = jnp.where(i < n_ht - 1, h1[W + tm:], zeros_w)

    # ---- W-edge validity masks, built in-register (no HBM traffic) ----
    col = lax.broadcasted_iota(jnp.int32, (tm, 1), 0)
    col = (col & (W - 1)) if (W & (W - 1)) == 0 else (col % W)
    mask_l = jnp.broadcast_to(col != 0, (tm, planes))        # 0 where x == 0
    mask_r = jnp.broadcast_to(col != (W - 1), (tm, planes))  # 0 where x == W-1
    zeros_tp = jnp.zeros((tm, planes), jnp.bfloat16)

    # ---- stage 2: conv2 (3x3, stride 1, pad 1) + bn2 + relu ----
    # Pack the 9 shifted flat-row windows into a (tm, 9*planes) bf16 slab and
    # run ONE K=9*planes matmul (accumulation stays inside the MXU).
    for k in range(9):
        dy, dx = divmod(k, 3)
        start = G - 1 + dy * W + dx
        tap = h1_ref[start:start + tm, :]
        if dx == 0:
            tap = jnp.where(mask_l, tap, zeros_tp)
        elif dx == 2:
            tap = jnp.where(mask_r, tap, zeros_tp)
        slab_ref[:, k * planes:(k + 1) * planes] = tap

    h2 = jnp.dot(slab_ref[...], w2_ref[...], preferred_element_type=jnp.float32)
    h2 = jnp.maximum(h2 * s2_ref[...] + b2_ref[...], 0.0)

    # ---- stage 3: conv3 (1x1) + bn3 + identity residual + relu ----
    h3 = jnp.dot(h2.astype(jnp.bfloat16), w3_ref[...],
                 preferred_element_type=jnp.float32)
    out = jnp.maximum(h3 * s3_ref[...] + b3_ref[...] + xc.astype(jnp.float32), 0.0)
    o_ref[0] = out


# ------------------------------ forward pass --------------------------------

def _resident(shape):
    """Full-array block with a constant index map (stays resident in VMEM)."""
    rank = len(shape)
    return pl.BlockSpec(shape, lambda *_: (0,) * rank)


def bottleneck_forward(x_nchw, p, *, tile_h=8):
    # bf16 HBM I/O for the activations (kernel is memory-bound at real sizes)
    x = jnp.transpose(x_nchw, (0, 2, 3, 1)).astype(jnp.bfloat16)   # NHWC
    N, H, W, Cin = x.shape
    planes = p['w1'].shape[1]
    out_ch = p['w3'].shape[1]
    assert Cin == out_ch, "identity residual needs inplanes == planes*expansion"
    assert W % 8 == 0, "W must be a multiple of 8 (16 preferred for bf16 packing)"

    th = max(1, min(tile_h, H))
    while H % th:                      # largest divisor of H not above tile_h
        th -= 1
    n_ht = H // th
    tm = th * W                        # flat rows per grid step

    xf = x.reshape(N, H * W, Cin)      # flatten spatial; channels on lanes
    w2f = p['w2'].reshape(9 * planes, planes)   # (9*planes, planes) bf16

    kernel = functools.partial(_bottleneck_kernel, tm=tm, W=W,
                               planes=planes, n_ht=n_ht)

    # VMEM budget (double-buffered I/O + resident weights + scratch), per gen.
    vmem_est = (
        2 * (tm + 2 * W) * Cin * 2                 # input center + halos, bf16, 2 bufs
        + 2 * tm * out_ch * 4                      # output, f32, 2 bufs
        + (Cin * planes + 9 * planes * planes + planes * out_ch) * 2   # weights bf16
        + 2 * (2 * planes + out_ch) * 4            # folded BN scale/bias f32
        + (tm + 2 * W + 2 * _GUARD) * planes * 2   # h1 scratch bf16
        + tm * 9 * planes * 2                      # im2col slab bf16
    )
    vmem_limit = int(min(max(2 * vmem_est + (8 << 20), 32 << 20), 48 << 20))

    mm_flops = 2 * N * H * W * (Cin * planes + 9 * planes * planes + planes * out_ch)
    bytes_accessed = (
        N * (H + 2 * n_ht) * W * Cin * 2           # bf16 reads incl. halo refetch
        + N * H * W * out_ch * 4                   # f32 output
        + (Cin * planes + 9 * planes * planes + planes * out_ch) * 2
        + 2 * (2 * planes + out_ch) * 4
    )

    grid = (N, n_ht)
    out = pl.pallas_call(
        kernel,
        out_shape=jax.ShapeDtypeStruct((N, H * W, out_ch), jnp.float32),
        grid=grid,
        in_specs=[
            # center tile of the input (also the residual)
            pl.BlockSpec((1, tm, Cin), lambda n, i: (n, i, 0)),
            # one-image-row halo above / below (clamped at the image border;
            # the clamped duplicates are zeroed in-kernel)
            pl.BlockSpec((1, W, Cin),
                         lambda n, i: (n, jnp.maximum(i * th - 1, 0), 0)),
            pl.BlockSpec((1, W, Cin),
                         lambda n, i: (n, jnp.minimum(i * th + th, H - 1), 0)),
            _resident(p['w1'].shape), _resident(p['s1'].shape), _resident(p['b1'].shape),
            _resident(w2f.shape), _resident(p['s2'].shape), _resident(p['b2'].shape),
            _resident(p['w3'].shape), _resident(p['s3'].shape), _resident(p['b3'].shape),
        ],
        out_specs=pl.BlockSpec((1, tm, out_ch), lambda n, i: (n, i, 0)),
        scratch_shapes=[
            pltpu.VMEM((tm + 2 * W + 2 * _GUARD, planes), jnp.bfloat16),  # h1
            pltpu.VMEM((tm, 9 * planes), jnp.bfloat16),                   # im2col slab
        ],
        compiler_params=pltpu.CompilerParams(
            dimension_semantics=("parallel", "parallel"),
            vmem_limit_bytes=vmem_limit),
        cost_estimate=pl.CostEstimate(flops=mm_flops, transcendentals=0,
                                      bytes_accessed=bytes_accessed),
    )(xf, xf, xf,
      p['w1'], p['s1'], p['b1'], w2f, p['s2'], p['b2'],
      p['w3'], p['s3'], p['b3'])

    return jnp.transpose(out.reshape(N, H, W, out_ch), (0, 3, 1, 2))   # NCHW


# --------------------------- params (synthetic) ------------------------------

def init_params(key, inplanes, planes, expansion=4):
    ks = jax.random.split(key, 15)

    def bn_fold(kg, kb, km, kv, c):
        gamma = 1.0 + 0.1 * jax.random.normal(kg, (c,), jnp.float32)
        beta = 0.1 * jax.random.normal(kb, (c,), jnp.float32)
        mean = 0.1 * jax.random.normal(km, (c,), jnp.float32)
        var = jnp.abs(jax.random.normal(kv, (c,), jnp.float32)) * 0.5 + 0.5
        scale = gamma / jnp.sqrt(var + EPS)
        bias = beta - mean * scale
        return scale.reshape(1, c), bias.reshape(1, c)

    p = {}
    # conv weights stored transposed for matmul, bf16: (Cin, Cout); 3x3 as (9, Cin, Cout)
    p['w1'] = (0.1 * jax.random.normal(ks[0], (inplanes, planes), jnp.float32)
               ).astype(jnp.bfloat16)
    p['w2'] = (0.1 * jax.random.normal(ks[1], (9, planes, planes), jnp.float32)
               ).astype(jnp.bfloat16)
    p['w3'] = (0.1 * jax.random.normal(ks[2], (planes, planes * expansion), jnp.float32)
               ).astype(jnp.bfloat16)
    p['s1'], p['b1'] = bn_fold(ks[3], ks[4], ks[5], ks[6], planes)
    p['s2'], p['b2'] = bn_fold(ks[7], ks[8], ks[9], ks[10], planes)
    p['s3'], p['b3'] = bn_fold(ks[11], ks[12], ks[13], ks[14], planes * expansion)
    return p


# ------------------------------ JAX reference --------------------------------

def bottleneck_ref(x_nchw, p):
    # Matches the kernel's numerics: bf16 activations on HBM, bf16 matmul
    # operands, f32 accumulation, f32 BN/residual math.
    x = jnp.transpose(x_nchw, (0, 2, 3, 1)).astype(jnp.bfloat16)
    planes = p['w1'].shape[1]
    out = jnp.einsum('nhwc,co->nhwo', x, p['w1'],
                     preferred_element_type=jnp.float32)
    out = jnp.maximum(out * p['s1'] + p['b1'], 0.0)
    w2 = p['w2'].reshape(3, 3, planes, planes)           # HWIO
    out = lax.conv_general_dilated(out.astype(jnp.bfloat16), w2, (1, 1), 'SAME',
                                   dimension_numbers=('NHWC', 'HWIO', 'NHWC'),
                                   preferred_element_type=jnp.float32)
    out = jnp.maximum(out * p['s2'] + p['b2'], 0.0)
    out = jnp.einsum('nhwc,co->nhwo', out.astype(jnp.bfloat16), p['w3'],
                     preferred_element_type=jnp.float32)
    out = jnp.maximum(out * p['s3'] + p['b3'] + x.astype(jnp.float32), 0.0)
    return jnp.transpose(out, (0, 3, 1, 2))


# ---------------------------------- main -------------------------------------

if __name__ == "__main__":
    key = jax.random.PRNGKey(0)
    kx, kp = jax.random.split(key)

    N, inplanes, H, W = 2, 16, 16, 16
    planes = 4                                  # expansion 4 -> out channels 16 == inplanes
    x = jax.random.normal(kx, (N, inplanes, H, W), jnp.float32)   # NCHW, like PyTorch
    params = init_params(kp, inplanes, planes)

    fwd = jax.jit(bottleneck_forward)
    out = jax.block_until_ready(fwd(x, params))
    ref = jax.block_until_ready(bottleneck_ref(x, params))

    assert out.shape == (N, planes * 4, H, W), out.shape
    max_err = float(jnp.max(jnp.abs(out - ref)))
    assert jnp.allclose(out, ref, rtol=5e-3, atol=5e-3), max_err
    print("KERNEL_OK")
</pallas_src>

<mosaic_0001>
module attributes {stable_mosaic.version = 11 : i64} {
  func.func @_bottleneck_kernel(%arg0: i32, %arg1: i32, %arg2: memref<1x128x16xbf16, #tpu.memory_space<vmem>>, %arg3: memref<1x16x16xbf16, #tpu.memory_space<vmem>>, %arg4: memref<1x16x16xbf16, #tpu.memory_space<vmem>>, %arg5: memref<16x4xbf16, #tpu.memory_space<vmem>>, %arg6: memref<1x4xf32, #tpu.memory_space<vmem>>, %arg7: memref<1x4xf32, #tpu.memory_space<vmem>>, %arg8: memref<36x4xbf16, #tpu.memory_space<vmem>>, %arg9: memref<1x4xf32, #tpu.memory_space<vmem>>, %arg10: memref<1x4xf32, #tpu.memory_space<vmem>>, %arg11: memref<4x16xbf16, #tpu.memory_space<vmem>>, %arg12: memref<1x16xf32, #tpu.memory_space<vmem>>, %arg13: memref<1x16xf32, #tpu.memory_space<vmem>>, %arg14: memref<1x128x16xf32, #tpu.memory_space<vmem>>, %arg15: memref<192x4xbf16, #tpu.memory_space<vmem>>, %arg16: memref<128x36xbf16, #tpu.memory_space<vmem>>) attributes {dimension_semantics = [#tpu.dimension_semantics<parallel>, #tpu.dimension_semantics<parallel>], iteration_bounds = array<i64: 2, 2>, scalar_prefetch = 0 : i64, scratch_operands = 2 : i64, tpu.core_type = #tpu.core_type<tc>, window_params = [{transform_indices = @transform_0, window_bounds = array<i64: 1, 128, 16>}, {transform_indices = @transform_1, window_bounds = array<i64: 1, 16, 16>}, {transform_indices = @transform_2, window_bounds = array<i64: 1, 16, 16>}, {pipeline_mode = #tpu.pipeline_mode<synchronous>, transform_indices = @transform_3, window_bounds = array<i64: 16, 4>}, {pipeline_mode = #tpu.pipeline_mode<synchronous>, transform_indices = @transform_4, window_bounds = array<i64: 1, 4>}, {pipeline_mode = #tpu.pipeline_mode<synchronous>, transform_indices = @transform_5, window_bounds = array<i64: 1, 4>}, {pipeline_mode = #tpu.pipeline_mode<synchronous>, transform_indices = @transform_6, window_bounds = array<i64: 36, 4>}, {pipeline_mode = #tpu.pipeline_mode<synchronous>, transform_indices = @transform_7, window_bounds = array<i64: 1, 4>}, {pipeline_mode = #tpu.pipeline_mode<synchronous>, transform_indices = @transform_8, window_bounds = array<i64: 1, 4>}, {pipeline_mode = #tpu.pipeline_mode<synchronous>, transform_indices = @transform_9, window_bounds = array<i64: 4, 16>}, {pipeline_mode = #tpu.pipeline_mode<synchronous>, transform_indices = @transform_10, window_bounds = array<i64: 1, 16>}, {pipeline_mode = #tpu.pipeline_mode<synchronous>, transform_indices = @transform_11, window_bounds = array<i64: 1, 16>}, {transform_indices = @transform_12, window_bounds = array<i64: 1, 128, 16>}]} {
    %c0 = arith.constant 0 : index
    %c0_0 = arith.constant 0 : index
    %c0_1 = arith.constant 0 : index
    %0 = vector.load %arg3[%c0, %c0_0, %c0_1] : memref<1x16x16xbf16, #tpu.memory_space<vmem>>, vector<1x16x16xbf16>
    %1 = vector.shape_cast %0 : vector<1x16x16xbf16> to vector<16x16xbf16>
    %c0_2 = arith.constant 0 : index
    %c0_3 = arith.constant 0 : index
    %c0_4 = arith.constant 0 : index
    %2 = vector.load %arg2[%c0_2, %c0_3, %c0_4] : memref<1x128x16xbf16, #tpu.memory_space<vmem>>, vector<1x128x16xbf16>
    %3 = vector.shape_cast %2 : vector<1x128x16xbf16> to vector<128x16xbf16>
    %c0_5 = arith.constant 0 : index
    %c0_6 = arith.constant 0 : index
    %c0_7 = arith.constant 0 : index
    %4 = vector.load %arg4[%c0_5, %c0_6, %c0_7] : memref<1x16x16xbf16, #tpu.memory_space<vmem>>, vector<1x16x16xbf16>
    %5 = vector.shape_cast %4 : vector<1x16x16xbf16> to vector<16x16xbf16>
    %6 = tpu.concatenate %1, %3, %5 in 0 : vector<16x16xbf16>, vector<128x16xbf16>, vector<16x16xbf16> -> vector<160x16xbf16>
    %c0_8 = arith.constant 0 : index
    %c0_9 = arith.constant 0 : index
    %7 = vector.load %arg5[%c0_8, %c0_9] : memref<16x4xbf16, #tpu.memory_space<vmem>>, vector<16x4xbf16>
    %cst = arith.constant dense<0.000000e+00> : vector<160x4xf32>
    %8 = tpu.matmul %6, %7, %cst {dimension_numbers = #tpu.dot_dimension_numbers<[1], [0], [0], [1], [0, 0, 1, 1], [], []>} : vector<160x16xbf16>, vector<16x4xbf16>, vector<160x4xf32> -> vector<160x4xf32>
    %c0_10 = arith.constant 0 : index
    %c0_11 = arith.constant 0 : index
    %9 = vector.load %arg6[%c0_10, %c0_11] : memref<1x4xf32, #tpu.memory_space<vmem>>, vector<1x4xf32>
    %10 = vector.broadcast %9 : vector<1x4xf32> to vector<160x4xf32>
    %11 = arith.mulf %8, %10 : vector<160x4xf32>
    %c0_12 = arith.constant 0 : index
    %c0_13 = arith.constant 0 : index
    %12 = vector.load %arg7[%c0_12, %c0_13] : memref<1x4xf32, #tpu.memory_space<vmem>>, vector<1x4xf32>
    %13 = vector.broadcast %12 : vector<1x4xf32> to vector<160x4xf32>
    %14 = arith.addf %11, %13 : vector<160x4xf32>
    %cst_14 = arith.constant 0.000000e+00 : f32
    %15 = vector.broadcast %cst_14 : f32 to vector<160x4xf32>
    %16 = arith.maximumf %14, %15 : vector<160x4xf32>
    %17 = arith.truncf %16 : vector<160x4xf32> to vector<160x4xbf16>
    %cst_15 = arith.constant 0.000000e+00 : bf16
    %18 = vector.broadcast %cst_15 : bf16 to vector<16x4xbf16>
    %cst_16 = arith.constant 0.000000e+00 : bf16
    %19 = vector.broadcast %cst_16 : bf16 to vector<16x4xbf16>
    %c0_17 = arith.constant 0 : index
    %c0_18 = arith.constant 0 : index
    %20 = vector.load %arg15[%c0_17, %c0_18] : memref<192x4xbf16, #tpu.memory_space<vmem>>, vector<16x4xbf16>
    tpu.vector_store %arg15[%c0_17, %c0_18], %18 {strides = array<i32>} : memref<192x4xbf16, #tpu.memory_space<vmem>>, vector<16x4xbf16>,
    %c176 = arith.constant 176 : index
    %c0_19 = arith.constant 0 : index
    %21 = vector.load %arg15[%c176, %c0_19] : memref<192x4xbf16, #tpu.memory_space<vmem>>, vector<16x4xbf16>
    tpu.vector_store %arg15[%c176, %c0_19], %18 {strides = array<i32>} : memref<192x4xbf16, #tpu.memory_space<vmem>>, vector<16x4xbf16>,
    %c0_i32 = arith.constant 0 : i32
    %22 = arith.cmpi sgt, %arg1, %c0_i32 : i32
    %23 = vector.extract_strided_slice %17 {offsets = [0, 0], sizes = [16, 4], strides = [1, 1]} : vector<160x4xbf16> to vector<16x4xbf16>
    %24 = arith.select %22, %23, %19 : vector<16x4xbf16>
    %c16 = arith.constant 16 : index
    %c0_20 = arith.constant 0 : index
    %25 = vector.load %arg15[%c16, %c0_20] : memref<192x4xbf16, #tpu.memory_space<vmem>>, vector<16x4xbf16>
    tpu.vector_store %arg15[%c16, %c0_20], %24 {strides = array<i32>} : memref<192x4xbf16, #tpu.memory_space<vmem>>, vector<16x4xbf16>,
    %26 = vector.extract_strided_slice %17 {offsets = [16, 0], sizes = [128, 4], strides = [1, 1]} : vector<160x4xbf16> to vector<128x4xbf16>
    %c32 = arith.constant 32 : index
    %c0_21 = arith.constant 0 : index
    %27 = vector.load %arg15[%c32, %c0_21] : memref<192x4xbf16, #tpu.memory_space<vmem>>, vector<128x4xbf16>
    tpu.vector_store %arg15[%c32, %c0_21], %26 {strides = array<i32>} : memref<192x4xbf16, #tpu.memory_space<vmem>>, vector<128x4xbf16>,
    %c1_i32 = arith.constant 1 : i32
    %28 = arith.cmpi slt, %arg1, %c1_i32 : i32
    %29 = vector.extract_strided_slice %17 {offsets = [144, 0], sizes = [16, 4], strides = [1, 1]} : vector<160x4xbf16> to vector<16x4xbf16>
    %30 = arith.select %28, %29, %19 : vector<16x4xbf16>
    %c160 = arith.constant 160 : index
    %c0_22 = arith.constant 0 : index
    %31 = vector.load %arg15[%c160, %c0_22] : memref<192x4xbf16, #tpu.memory_space<vmem>>, vector<16x4xbf16>
    tpu.vector_store %arg15[%c160, %c0_22], %30 {strides = array<i32>} : memref<192x4xbf16, #tpu.memory_space<vmem>>, vector<16x4xbf16>,
    %32 = tpu.iota {dimensions = array<i32: 0>} : vector<128x1xi32>
    %c15_i32 = arith.constant 15 : i32
    %33 = vector.broadcast %c15_i32 : i32 to vector<128x1xi32>
    %34 = arith.andi %32, %33 : vector<128x1xi32>
    %c0_i32_23 = arith.constant 0 : i32
    %35 = vector.broadcast %c0_i32_23 : i32 to vector<128x1xi32>
    %36 = arith.cmpi ne, %34, %35 : vector<128x1xi32>
    %37 = vector.shape_cast %36 : vector<128x1xi1> to vector<128x1xi1>
    %38 = vector.broadcast %37 : vector<128x1xi1> to vector<128x4xi1>
    %c15_i32_24 = arith.constant 15 : i32
    %39 = vector.broadcast %c15_i32_24 : i32 to vector<128x1xi32>
    %40 = arith.cmpi ne, %34, %39 : vector<128x1xi32>
    %41 = vector.shape_cast %40 : vector<128x1xi1> to vector<128x1xi1>
    %42 = vector.broadcast %41 : vector<128x1xi1> to vector<128x4xi1>
    %cst_25 = arith.constant 0.000000e+00 : bf16
    %43 = vector.broadcast %cst_25 : bf16 to vector<128x4xbf16>
    %c15 = arith.constant 15 : index
    %c0_26 = arith.constant 0 : index
    %44 = vector.load %arg15[%c15, %c0_26] : memref<192x4xbf16, #tpu.memory_space<vmem>>, vector<128x4xbf16>
    %45 = arith.select %38, %44, %43 : vector<128x4xi1>, vector<128x4xbf16>
    %c0_27 = arith.constant 0 : index
    %c0_28 = arith.constant 0 : index
    %46 = vector.load %arg16[%c0_27, %c0_28] : memref<128x36xbf16, #tpu.memory_space<vmem>>, vector<128x4xbf16>
    tpu.vector_store %arg16[%c0_27, %c0_28], %45 {strides = array<i32>} : memref<128x36xbf16, #tpu.memory_space<vmem>>, vector<128x4xbf16>,
    %c16_29 = arith.constant 16 : index
    %c0_30 = arith.constant 0 : index
    %47 = vector.load %arg15[%c16_29, %c0_30] : memref<192x4xbf16, #tpu.memory_space<vmem>>, vector<128x4xbf16>
    %c0_31 = arith.constant 0 : index
    %c4 = arith.constant 4 : index
    %48 = vector.load %arg16[%c0_31, %c4] : memref<128x36xbf16, #tpu.memory_space<vmem>>, vector<128x4xbf16>
    tpu.vector_store %arg16[%c0_31, %c4], %47 {strides = array<i32>} : memref<128x36xbf16, #tpu.memory_space<vmem>>, vector<128x4xbf16>,
    %c17 = arith.constant 17 : index
    %c0_32 = arith.constant 0 : index
    %49 = vector.load %arg15[%c17, %c0_32] : memref<192x4xbf16, #tpu.memory_space<vmem>>, vector<128x4xbf16>
    %50 = arith.select %42, %49, %43 : vector<128x4xi1>, vector<128x4xbf16>
    %c0_33 = arith.constant 0 : index
    %c8 = arith.constant 8 : index
    %51 = vector.load %arg16[%c0_33, %c8] : memref<128x36xbf16, #tpu.memory_space<vmem>>, vector<128x4xbf16>
    tpu.vector_store %arg16[%c0_33, %c8], %50 {strides = array<i32>} : memref<128x36xbf16, #tpu.memory_space<vmem>>, vector<128x4xbf16>,
    %c31 = arith.constant 31 : index
    %c0_34 = arith.constant 0 : index
    %52 = vector.load %arg15[%c31, %c0_34] : memref<192x4xbf16, #tpu.memory_space<vmem>>, vector<128x4xbf16>
    %53 = arith.select %38, %52, %43 : vector<128x4xi1>, vector<128x4xbf16>
    %c0_35 = arith.constant 0 : index
    %c12 = arith.constant 12 : index
    %54 = vector.load %arg16[%c0_35, %c12] : memref<128x36xbf16, #tpu.memory_space<vmem>>, vector<128x4xbf16>
    tpu.vector_store %arg16[%c0_35, %c12], %53 {strides = array<i32>} : memref<128x36xbf16, #tpu.memory_space<vmem>>, vector<128x4xbf16>,
    %c32_36 = arith.constant 32 : index
    %c0_37 = arith.constant 0 : index
    %55 = vector.load %arg15[%c32_36, %c0_37] : memref<192x4xbf16, #tpu.memory_space<vmem>>, vector<128x4xbf16>
    %c0_38 = arith.constant 0 : index
    %c16_39 = arith.constant 16 : index
    %56 = vector.load %arg16[%c0_38, %c16_39] : memref<128x36xbf16, #tpu.memory_space<vmem>>, vector<128x4xbf16>
    tpu.vector_store %arg16[%c0_38, %c16_39], %55 {strides = array<i32>} : memref<128x36xbf16, #tpu.memory_space<vmem>>, vector<128x4xbf16>,
    %c33 = arith.constant 33 : index
    %c0_40 = arith.constant 0 : index
    %57 = vector.load %arg15[%c33, %c0_40] : memref<192x4xbf16, #tpu.memory_space<vmem>>, vector<128x4xbf16>
    %58 = arith.select %42, %57, %43 : vector<128x4xi1>, vector<128x4xbf16>
    %c0_41 = arith.constant 0 : index
    %c20 = arith.constant 20 : index
    %59 = vector.load %arg16[%c0_41, %c20] : memref<128x36xbf16, #tpu.memory_space<vmem>>, vector<128x4xbf16>
    tpu.vector_store %arg16[%c0_41, %c20], %58 {strides = array<i32>} : memref<128x36xbf16, #tpu.memory_space<vmem>>, vector<128x4xbf16>,
    %c47 = arith.constant 47 : index
    %c0_42 = arith.constant 0 : index
    %60 = vector.load %arg15[%c47, %c0_42] : memref<192x4xbf16, #tpu.memory_space<vmem>>, vector<128x4xbf16>
    %61 = arith.select %38, %60, %43 : vector<128x4xi1>, vector<128x4xbf16>
    %c0_43 = arith.constant 0 : index
    %c24 = arith.constant 24 : index
    %62 = vector.load %arg16[%c0_43, %c24] : memref<128x36xbf16, #tpu.memory_space<vmem>>, vector<128x4xbf16>
    tpu.vector_store %arg16[%c0_43, %c24], %61 {strides = array<i32>} : memref<128x36xbf16, #tpu.memory_space<vmem>>, vector<128x4xbf16>,
    %c48 = arith.constant 48 : index
    %c0_44 = arith.constant 0 : index
    %63 = vector.load %arg15[%c48, %c0_44] : memref<192x4xbf16, #tpu.memory_space<vmem>>, vector<128x4xbf16>
    %c0_45 = arith.constant 0 : index
    %c28 = arith.constant 28 : index
    %64 = vector.load %arg16[%c0_45, %c28] : memref<128x36xbf16, #tpu.memory_space<vmem>>, vector<128x4xbf16>
    tpu.vector_store %arg16[%c0_45, %c28], %63 {strides = array<i32>} : memref<128x36xbf16, #tpu.memory_space<vmem>>, vector<128x4xbf16>,
    %c49 = arith.constant 49 : index
    %c0_46 = arith.constant 0 : index
    %65 = vector.load %arg15[%c49, %c0_46] : memref<192x4xbf16, #tpu.memory_space<vmem>>, vector<128x4xbf16>
    %66 = arith.select %42, %65, %43 : vector<128x4xi1>, vector<128x4xbf16>
    %c0_47 = arith.constant 0 : index
    %c32_48 = arith.constant 32 : index
    %67 = vector.load %arg16[%c0_47, %c32_48] : memref<128x36xbf16, #tpu.memory_space<vmem>>, vector<128x4xbf16>
    tpu.vector_store %arg16[%c0_47, %c32_48], %66 {strides = array<i32>} : memref<128x36xbf16, #tpu.memory_space<vmem>>, vector<128x4xbf16>,
    %c0_49 = arith.constant 0 : index
    %c0_50 = arith.constant 0 : index
    %68 = vector.load %arg16[%c0_49, %c0_50] : memref<128x36xbf16, #tpu.memory_space<vmem>>, vector<128x36xbf16>
    %c0_51 = arith.constant 0 : index
    %c0_52 = arith.constant 0 : index
    %69 = vector.load %arg8[%c0_51, %c0_52] : memref<36x4xbf16, #tpu.memory_space<vmem>>, vector<36x4xbf16>
    %cst_53 = arith.constant dense<0.000000e+00> : vector<128x4xf32>
    %70 = tpu.matmul %68, %69, %cst_53 {dimension_numbers = #tpu.dot_dimension_numbers<[1], [0], [0], [1], [0, 0, 1, 1], [], []>} : vector<128x36xbf16>, vector<36x4xbf16>, vector<128x4xf32> -> vector<128x4xf32>
    %c0_54 = arith.constant 0 : index
    %c0_55 = arith.constant 0 : index
    %71 = vector.load %arg9[%c0_54, %c0_55] : memref<1x4xf32, #tpu.memory_space<vmem>>, vector<1x4xf32>
    %72 = vector.broadcast %71 : vector<1x4xf32> to vector<128x4xf32>
    %73 = arith.mulf %70, %72 : vector<128x4xf32>
    %c0_56 = arith.constant 0 : index
    %c0_57 = arith.constant 0 : index
    %74 = vector.load %arg10[%c0_56, %c0_57] : memref<1x4xf32, #tpu.memory_space<vmem>>, vector<1x4xf32>
    %75 = vector.broadcast %74 : vector<1x4xf32> to vector<128x4xf32>
    %76 = arith.addf %73, %75 : vector<128x4xf32>
    %cst_58 = arith.constant 0.000000e+00 : f32
    %77 = vector.broadcast %cst_58 : f32 to vector<128x4xf32>
    %78 = arith.maximumf %76, %77 : vector<128x4xf32>
    %79 = arith.truncf %78 : vector<128x4xf32> to vector<128x4xbf16>
    %c0_59 = arith.constant 0 : index
    %c0_60 = arith.constant 0 : index
    %80 = vector.load %arg11[%c0_59, %c0_60] : memref<4x16xbf16, #tpu.memory_space<vmem>>, vector<4x16xbf16>
    %cst_61 = arith.constant dense<0.000000e+00> : vector<128x16xf32>
    %81 = tpu.matmul %79, %80, %cst_61 {dimension_numbers = #tpu.dot_dimension_numbers<[1], [0], [0], [1], [0, 0, 1, 1], [], []>} : vector<128x4xbf16>, vector<4x16xbf16>, vector<128x16xf32> -> vector<128x16xf32>
    %c0_62 = arith.constant 0 : index
    %c0_63 = arith.constant 0 : index
    %82 = vector.load %arg12[%c0_62, %c0_63] : memref<1x16xf32, #tpu.memory_space<vmem>>, vector<1x16xf32>
    %83 = vector.broadcast %82 : vector<1x16xf32> to vector<128x16xf32>
    %84 = arith.mulf %81, %83 : vector<128x16xf32>
    %c0_64 = arith.constant 0 : index
    %c0_65 = arith.constant 0 : index
    %85 = vector.load %arg13[%c0_64, %c0_65] : memref<1x16xf32, #tpu.memory_space<vmem>>, vector<1x16xf32>
    %86 = vector.broadcast %85 : vector<1x16xf32> to vector<128x16xf32>
    %87 = arith.addf %84, %86 : vector<128x16xf32>
    %88 = arith.extf %3 : vector<128x16xbf16> to vector<128x16xf32>
    %89 = arith.addf %87, %88 : vector<128x16xf32>
    %cst_66 = arith.constant 0.000000e+00 : f32
    %90 = vector.broadcast %cst_66 : f32 to vector<128x16xf32>
    %91 = arith.maximumf %89, %90 : vector<128x16xf32>
    %c0_67 = arith.constant 0 : index
    %c0_68 = arith.constant 0 : index
    %c0_69 = arith.constant 0 : index
    %92 = vector.load %arg14[%c0_67, %c0_68, %c0_69] : memref<1x128x16xf32, #tpu.memory_space<vmem>>, vector<1x128x16xf32>
    %93 = vector.shape_cast %92 : vector<1x128x16xf32> to vector<128x16xf32>
    %94 = vector.shape_cast %91 : vector<128x16xf32> to vector<1x128x16xf32>
    tpu.vector_store %arg14[%c0_67, %c0_68, %c0_69], %94 {strides = array<i32>} : memref<1x128x16xf32, #tpu.memory_space<vmem>>, vector<1x128x16xf32>,
    return
  }
  func.func @transform_0(%arg0: i32, %arg1: i32) -> (i32, i32, i32) {
    %c0_i32 = arith.constant 0 : i32
    %c0_i32_0 = arith.constant 0 : i32
    return %arg0, %arg1, %c0_i32 : i32, i32, i32
  }
  func.func @transform_1(%arg0: i32, %arg1: i32) -> (i32, i32, i32) {
    %c8_i32 = arith.constant 8 : i32
    %0 = arith.muli %arg1, %c8_i32 : i32
    %c1_i32 = arith.constant 1 : i32
    %1 = arith.subi %0, %c1_i32 : i32
    %c0_i32 = arith.constant 0 : i32
    %2 = arith.maxsi %1, %c0_i32 : i32
    %c0_i32_0 = arith.constant 0 : i32
    %c0_i32_1 = arith.constant 0 : i32
    return %arg0, %2, %c0_i32_0 : i32, i32, i32
  }
  func.func @transform_2(%arg0: i32, %arg1: i32) -> (i32, i32, i32) {
    %c8_i32 = arith.constant 8 : i32
    %0 = arith.muli %arg1, %c8_i32 : i32
    %c8_i32_0 = arith.constant 8 : i32
    %1 = arith.addi %0, %c8_i32_0 : i32
    %c15_i32 = arith.constant 15 : i32
    %2 = arith.minsi %1, %c15_i32 : i32
    %c0_i32 = arith.constant 0 : i32
    %c0_i32_1 = arith.constant 0 : i32
    return %arg0, %2, %c0_i32 : i32, i32, i32
  }
  func.func @transform_3(%arg0: i32, %arg1: i32) -> (i32, i32) {
    %c0_i32 = arith.constant 0 : i32
    %c0_i32_0 = arith.constant 0 : i32
    %c0_i32_1 = arith.constant 0 : i32
    return %c0_i32, %c0_i32_0 : i32, i32
  }
  func.func @transform_4(%arg0: i32, %arg1: i32) -> (i32, i32) {
    %c0_i32 = arith.constant 0 : i32
    %c0_i32_0 = arith.constant 0 : i32
    %c0_i32_1 = arith.constant 0 : i32
    return %c0_i32, %c0_i32_0 : i32, i32
  }
  func.func @transform_5(%arg0: i32, %arg1: i32) -> (i32, i32) {
    %c0_i32 = arith.constant 0 : i32
    %c0_i32_0 = arith.constant 0 : i32
    %c0_i32_1 = arith.constant 0 : i32
    return %c0_i32, %c0_i32_0 : i32, i32
  }
  func.func @transform_6(%arg0: i32, %arg1: i32) -> (i32, i32) {
    %c0_i32 = arith.constant 0 : i32
    %c0_i32_0 = arith.constant 0 : i32
    %c0_i32_1 = arith.constant 0 : i32
    return %c0_i32, %c0_i32_0 : i32, i32
  }
  func.func @transform_7(%arg0: i32, %arg1: i32) -> (i32, i32) {
    %c0_i32 = arith.constant 0 : i32
    %c0_i32_0 = arith.constant 0 : i32
    %c0_i32_1 = arith.constant 0 : i32
    return %c0_i32, %c0_i32_0 : i32, i32
  }
  func.func @transform_8(%arg0: i32, %arg1: i32) -> (i32, i32) {
    %c0_i32 = arith.constant 0 : i32
    %c0_i32_0 = arith.constant 0 : i32
    %c0_i32_1 = arith.constant 0 : i32
    return %c0_i32, %c0_i32_0 : i32, i32
  }
  func.func @transform_9(%arg0: i32, %arg1: i32) -> (i32, i32) {
    %c0_i32 = arith.constant 0 : i32
    %c0_i32_0 = arith.constant 0 : i32
    %c0_i32_1 = arith.constant 0 : i32
    return %c0_i32, %c0_i32_0 : i32, i32
  }
  func.func @transform_10(%arg0: i32, %arg1: i32) -> (i32, i32) {
    %c0_i32 = arith.constant 0 : i32
    %c0_i32_0 = arith.constant 0 : i32
    %c0_i32_1 = arith.constant 0 : i32
    return %c0_i32, %c0_i32_0 : i32, i32
  }
  func.func @transform_11(%arg0: i32, %arg1: i32) -> (i32, i32) {
    %c0_i32 = arith.constant 0 : i32
    %c0_i32_0 = arith.constant 0 : i32
    %c0_i32_1 = arith.constant 0 : i32
    return %c0_i32, %c0_i32_0 : i32, i32
  }
  func.func @transform_12(%arg0: i32, %arg1: i32) -> (i32, i32, i32) {
    %c0_i32 = arith.constant 0 : i32
    %c0_i32_0 = arith.constant 0 : i32
    return %arg0, %arg1, %c0_i32 : i32, i32, i32
  }
}

</mosaic_0001>

<llo_original>
// kernel: bottleneck_forward.1
$region0: #{bottleneck_forward.1}
  #allocation0 [shape = 'u32[]', space=smem, size = 0x4, offset = 0x4, fixed_abs, tag = 'smem constant byte address 0x4 - core index']
  #allocation1 [shape = 'u32[144,128]{1,0:T(1,128)}', space=vmem, size = 0x12000, scoped, tag = 'internal scratch']
  #allocation2 [shape = 'bf16[192,4]{1,0:T(16,128)(2,1)}', space=vmem, size = 0xc000, scoped, tag = 'scratch operand']
  #allocation3 [shape = 'bf16[128,36]{1,0:T(16,128)(2,1)}', space=vmem, size = 0x8000, scoped, tag = 'scratch operand']
  %s0 = inlined_call_operand.vmem [shape: bf16[2,256,16], index: 0, kind: input, shape index: {}, may-alias: {0,1,2}]
  %s1 = inlined_call_operand.vmem [shape: bf16[2,256,16], index: 1, kind: input, shape index: {}, may-alias: {0,1,2}]
  %s2 = inlined_call_operand.vmem [shape: bf16[2,256,16], index: 2, kind: input, shape index: {}, may-alias: {0,1,2}]
  %s3 = inlined_call_operand.vmem [shape: bf16[16,4], index: 3, kind: input, shape index: {}]
  %s4 = inlined_call_operand.vmem [shape: f32[1,4], index: 4, kind: input, shape index: {}]
  %s5 = inlined_call_operand.vmem [shape: f32[1,4], index: 5, kind: input, shape index: {}]
  %s6 = inlined_call_operand.vmem [shape: bf16[36,4], index: 6, kind: input, shape index: {}]
  %s7 = inlined_call_operand.vmem [shape: f32[1,4], index: 7, kind: input, shape index: {}]
  %s8 = inlined_call_operand.vmem [shape: f32[1,4], index: 8, kind: input, shape index: {}]
  %s9 = inlined_call_operand.vmem [shape: bf16[4,16], index: 9, kind: input, shape index: {}]
  %s10 = inlined_call_operand.vmem [shape: f32[1,16], index: 10, kind: input, shape index: {}]
  %s11 = inlined_call_operand.vmem [shape: f32[1,16], index: 11, kind: input, shape index: {}]
  %s12 = inlined_call_operand.vmem [shape: f32[2,256,16], index: 12, kind: output, shape index: {}]
  %s13 = sld [smem:[#allocation0]]
  $region81: #{bottleneck_forward.1} parent=0
    _
  %s15 = ssub.s32 1, %s13
  %s16 = scalar_select 0, %s15, %s13
  loop: start=0, step=1, limit=6
  $region2: #{bottleneck_forward.1} parent=0 // loop_pre_header
    _
  $region3: #{bottleneck_forward.1} parent=0 // loop_header
    %s18 = sphi 0, %s22
    %p19 = scmp.ge.s32.totalorder %s18, 6
    %s25 = sphi 0, %s37
    %s26 = sphi 0, %s33
    %s27 = sphi 0, %s25
    %s28 = sphi 0, %s26
    %s29 = sphi 0, %s27
    %s30 = sphi 0, %s28
    %s42 = sphi 0, %s44
    %s45 = sphi 0, %s42
    %s46 = sphi 0, %s45
    %s62 = sphi 0, %s46
    %s78 = sphi 0, %s80
    %s81 = sphi 0, %s78
    %s82 = sphi 0, %s81
    %s98 = sphi 0, %s82
    %s114 = sphi 0, %s116
    %s117 = sphi 0, %s114
    %s118 = sphi 0, %s117
    %s134 = sphi 0, %s118
    %s138 = sphi 0, %s138
    %s140 = sphi 0, %s138
    %s141 = sphi 0, %s140
    %s155 = sphi 0, %s141
    %s159 = sphi 0, %s159
    %s161 = sphi 0, %s159
    %s162 = sphi 0, %s161
    %s176 = sphi 0, %s162
    %s180 = sphi 0, %s180
    %s182 = sphi 0, %s180
    %s183 = sphi 0, %s182
    %s197 = sphi 0, %s183
    %s201 = sphi 0, %s201
    %s203 = sphi 0, %s201
    %s204 = sphi 0, %s203
    %s218 = sphi 0, %s204
    %s222 = sphi 0, %s222
    %s224 = sphi 0, %s222
    %s225 = sphi 0, %s224
    %s239 = sphi 0, %s225
    %s243 = sphi 0, %s243
    %s245 = sphi 0, %s243
    %s246 = sphi 0, %s245
    %s260 = sphi 0, %s246
    %s264 = sphi 0, %s264
    %s266 = sphi 0, %s264
    %s267 = sphi 0, %s266
    %s281 = sphi 0, %s267
    %s285 = sphi 0, %s285
    %s287 = sphi 0, %s285
    %s288 = sphi 0, %s287
    %s302 = sphi 0, %s288
    %s306 = sphi 0, %s306
    %s308 = sphi 0, %s306
    %s309 = sphi 0, %s308
    %s323 = sphi 0, %s309
    %s331 = sphi 0, %s333
    %s334 = sphi 0, %s331
    %s335 = sphi 0, %s334
    %s351 = sphi 0, %s335
  $region4: #{bottleneck_forward.1} parent=0 // loop_header_branch
    %21 = sbr.rel (%p19) target = $region8
  $region5: #{bottleneck_forward.1} parent=0 // loop_body
    %s23 = ssub.s32 %s18, 1
    %s24 = ssub.s32 %s18, 2
    %s31 = sadd.s32 1, %s26
    %p32 = scmp.ge.s32.totalorder %s31, 2
    %s33 = scalar_select %p32, 0, %s31
    %s34 = sadd.s32 1, %s25
    %s35 = scalar_select %p32, %s34, %s25
    %p36 = scmp.ge.s32.totalorder %s35, 2
    %s37 = scalar_select %p36, 0, %s35
    %s38 = ssub.s32 %s25, %s37
    %s39 = ssub.s32 %s26, %s33
    %s40 = sor.u32 %s38, %s39
    %p41 = scmp.eq.s32.totalorder %s40, 0
    %s43 = sadd.s32 %s42, 1
    %s44 = scalar_select %p41, %s42, %s43
    %p47 = pneg %p41
    %p48 = scmp.eq.s32.totalorder %s18, 3
    %p49 = por %p47, %p48
    %p50 = scmp.ne.s32.totalorder %s42, %s45
    %p51 = scmp.eq.s32.totalorder %s18, 0
    %p52 = por %p50, %p51
    %p53 = scmp.ne.s32.totalorder %s42, %s45
    %p54 = scmp.eq.s32.totalorder %s23, 3
    %p55 = por %p53, %p54
    %p56 = scmp.ne.s32.totalorder %s45, %s46
    %p57 = scmp.eq.s32.totalorder %s23, 0
    %p58 = por %p56, %p57
    %p59 = scmp.ne.s32.totalorder %s45, %s46
    %p60 = scmp.eq.s32.totalorder %s24, 3
    %p61 = por %p59, %p60
    %p63 = scmp.ne.s32.totalorder %s46, %s62
    %p64 = scmp.eq.s32.totalorder %s24, 0
    %p65 = por %p63, %p64
    %s66 = smul.u32 %s26, 8
    %s67 = ssub.s32 %s66, 1
    %p68 = scmp.gt.s32.totalorder %s67, 0
    %s69 = scalar_select %p68, %s67, 0
    %s70 = smul.u32 %s33, 8
    %s71 = ssub.s32 %s70, 1
    %p72 = scmp.gt.s32.totalorder %s71, 0
    %s73 = scalar_select %p72, %s71, 0
    %s74 = ssub.s32 %s25, %s37
    %s75 = ssub.s32 %s69, %s73
    %s76 = sor.u32 %s74, %s75
    %p77 = scmp.eq.s32.totalorder %s76, 0
    %s79 = sadd.s32 %s78, 1
    %s80 = scalar_select %p77, %s78, %s79
    %p83 = pneg %p77
    %p84 = scmp.eq.s32.totalorder %s18, 3
    %p85 = por %p83, %p84
    %p86 = scmp.ne.s32.totalorder %s78, %s81
    %p87 = scmp.eq.s32.totalorder %s18, 0
    %p88 = por %p86, %p87
    %p89 = scmp.ne.s32.totalorder %s78, %s81
    %p90 = scmp.eq.s32.totalorder %s23, 3
    %p91 = por %p89, %p90
    %p92 = scmp.ne.s32.totalorder %s81, %s82
    %p93 = scmp.eq.s32.totalorder %s23, 0
    %p94 = por %p92, %p93
    %p95 = scmp.ne.s32.totalorder %s81, %s82
    %p96 = scmp.eq.s32.totalorder %s24, 3
    %p97 = por %p95, %p96
    %p99 = scmp.ne.s32.totalorder %s82, %s98
    %p100 = scmp.eq.s32.totalorder %s24, 0
    %p101 = por %p99, %p100
    %s102 = smul.u32 %s26, 8
    %s103 = sadd.s32 %s102, 8
    %p104 = scmp.lt.s32.totalorder %s103, 15
    %s105 = scalar_select %p104, %s103, 15
    %s106 = smul.u32 %s33, 8
    %s107 = sadd.s32 %s106, 8
    %p108 = scmp.lt.s32.totalorder %s107, 15
    %s109 = scalar_select %p108, %s107, 15
    %s110 = ssub.s32 %s25, %s37
    %s111 = ssub.s32 %s105, %s109
    %s112 = sor.u32 %s110, %s111
    %p113 = scmp.eq.s32.totalorder %s112, 0
    %s115 = sadd.s32 %s114, 1
    %s116 = scalar_select %p113, %s114, %s115
    %p119 = pneg %p113
    %p120 = scmp.eq.s32.totalorder %s18, 3
    %p121 = por %p119, %p120
    %p122 = scmp.ne.s32.totalorder %s114, %s117
    %p123 = scmp.eq.s32.totalorder %s18, 0
    %p124 = por %p122, %p123
    %p125 = scmp.ne.s32.totalorder %s114, %s117
    %p126 = scmp.eq.s32.totalorder %s23, 3
    %p127 = por %p125, %p126
    %p128 = scmp.ne.s32.totalorder %s117, %s118
    %p129 = scmp.eq.s32.totalorder %s23, 0
    %p130 = por %p128, %p129
    %p131 = scmp.ne.s32.totalorder %s117, %s118
    %p132 = scmp.eq.s32.totalorder %s24, 3
    %p133 = por %p131, %p132
    %p135 = scmp.ne.s32.totalorder %s118, %s134
    %p136 = scmp.eq.s32.totalorder %s24, 0
    %p137 = por %p135, %p136
    %s139 = sadd.s32 %s138, 1
    %p142 = scmp.eq.s32.totalorder %s18, 3
    %p143 = scmp.ne.s32.totalorder %s138, %s140
    %p144 = scmp.eq.s32.totalorder %s18, 0
    %p145 = por %p143, %p144
    %p146 = scmp.ne.s32.totalorder %s138, %s140
    %p147 = scmp.eq.s32.totalorder %s23, 3
    %p148 = por %p146, %p147
    %p149 = scmp.ne.s32.totalorder %s140, %s141
    %p150 = scmp.eq.s32.totalorder %s23, 0
    %p151 = por %p149, %p150
    %p152 = scmp.ne.s32.totalorder %s140, %s141
    %p153 = scmp.eq.s32.totalorder %s24, 3
    %p154 = por %p152, %p153
    %p156 = scmp.ne.s32.totalorder %s141, %s155
    %p157 = scmp.eq.s32.totalorder %s24, 0
    %p158 = por %p156, %p157
    %s160 = sadd.s32 %s159, 1
    %p163 = scmp.eq.s32.totalorder %s18, 3
    %p164 = scmp.ne.s32.totalorder %s159, %s161
    %p165 = scmp.eq.s32.totalorder %s18, 0
    %p166 = por %p164, %p165
    %p167 = scmp.ne.s32.totalorder %s159, %s161
    %p168 = scmp.eq.s32.totalorder %s23, 3
    %p169 = por %p167, %p168
    %p170 = scmp.ne.s32.totalorder %s161, %s162
    %p171 = scmp.eq.s32.totalorder %s23, 0
    %p172 = por %p170, %p171
    %p173 = scmp.ne.s32.totalorder %s161, %s162
    %p174 = scmp.eq.s32.totalorder %s24, 3
    %p175 = por %p173, %p174
    %p177 = scmp.ne.s32.totalorder %s162, %s176
    %p178 = scmp.eq.s32.totalorder %s24, 0
    %p179 = por %p177, %p178
    %s181 = sadd.s32 %s180, 1
    %p184 = scmp.eq.s32.totalorder %s18, 3
    %p185 = scmp.ne.s32.totalorder %s180, %s182
    %p186 = scmp.eq.s32.totalorder %s18, 0
    %p187 = por %p185, %p186
    %p188 = scmp.ne.s32.totalorder %s180, %s182
    %p189 = scmp.eq.s32.totalorder %s23, 3
    %p190 = por %p188, %p189
    %p191 = scmp.ne.s32.totalorder %s182, %s183
    %p192 = scmp.eq.s32.totalorder %s23, 0
    %p193 = por %p191, %p192
    %p194 = scmp.ne.s32.totalorder %s182, %s183
    %p195 = scmp.eq.s32.totalorder %s24, 3
    %p196 = por %p194, %p195
    %p198 = scmp.ne.s32.totalorder %s183, %s197
    %p199 = scmp.eq.s32.totalorder %s24, 0
    %p200 = por %p198, %p199
    %s202 = sadd.s32 %s201, 1
    %p205 = scmp.eq.s32.totalorder %s18, 3
    %p206 = scmp.ne.s32.totalorder %s201, %s203
    %p207 = scmp.eq.s32.totalorder %s18, 0
    %p208 = por %p206, %p207
    %p209 = scmp.ne.s32.totalorder %s201, %s203
    %p210 = scmp.eq.s32.totalorder %s23, 3
    %p211 = por %p209, %p210
    %p212 = scmp.ne.s32.totalorder %s203, %s204
    %p213 = scmp.eq.s32.totalorder %s23, 0
    %p214 = por %p212, %p213
    %p215 = scmp.ne.s32.totalorder %s203, %s204
    %p216 = scmp.eq.s32.totalorder %s24, 3
    %p217 = por %p215, %p216
    %p219 = scmp.ne.s32.totalorder %s204, %s218
    %p220 = scmp.eq.s32.totalorder %s24, 0
    %p221 = por %p219, %p220
    %s223 = sadd.s32 %s222, 1
    %p226 = scmp.eq.s32.totalorder %s18, 3
    %p227 = scmp.ne.s32.totalorder %s222, %s224
    %p228 = scmp.eq.s32.totalorder %s18, 0
    %p229 = por %p227, %p228
    %p230 = scmp.ne.s32.totalorder %s222, %s224
    %p231 = scmp.eq.s32.totalorder %s23, 3
    %p232 = por %p230, %p231
    %p233 = scmp.ne.s32.totalorder %s224, %s225
    %p234 = scmp.eq.s32.totalorder %s23, 0
    %p235 = por %p233, %p234
    %p236 = scmp.ne.s32.totalorder %s224, %s225
    %p237 = scmp.eq.s32.totalorder %s24, 3
    %p238 = por %p236, %p237
    %p240 = scmp.ne.s32.totalorder %s225, %s239
    %p241 = scmp.eq.s32.totalorder %s24, 0
    %p242 = por %p240, %p241
    %s244 = sadd.s32 %s243, 1
    %p247 = scmp.eq.s32.totalorder %s18, 3
    %p248 = scmp.ne.s32.totalorder %s243, %s245
    %p249 = scmp.eq.s32.totalorder %s18, 0
    %p250 = por %p248, %p249
    %p251 = scmp.ne.s32.totalorder %s243, %s245
    %p252 = scmp.eq.s32.totalorder %s23, 3
    %p253 = por %p251, %p252
    %p254 = scmp.ne.s32.totalorder %s245, %s246
    %p255 = scmp.eq.s32.totalorder %s23, 0
    %p256 = por %p254, %p255
    %p257 = scmp.ne.s32.totalorder %s245, %s246
    %p258 = scmp.eq.s32.totalorder %s24, 3
    %p259 = por %p257, %p258
    %p261 = scmp.ne.s32.totalorder %s246, %s260
    %p262 = scmp.eq.s32.totalorder %s24, 0
    %p263 = por %p261, %p262
    %s265 = sadd.s32 %s264, 1
    %p268 = scmp.eq.s32.totalorder %s18, 3
    %p269 = scmp.ne.s32.totalorder %s264, %s266
    %p270 = scmp.eq.s32.totalorder %s18, 0
    %p271 = por %p269, %p270
    %p272 = scmp.ne.s32.totalorder %s264, %s266
    %p273 = scmp.eq.s32.totalorder %s23, 3
    %p274 = por %p272, %p273
    %p275 = scmp.ne.s32.totalorder %s266, %s267
    %p276 = scmp.eq.s32.totalorder %s23, 0
    %p277 = por %p275, %p276
    %p278 = scmp.ne.s32.totalorder %s266, %s267
    %p279 = scmp.eq.s32.totalorder %s24, 3
    %p280 = por %p278, %p279
    %p282 = scmp.ne.s32.totalorder %s267, %s281
    %p283 = scmp.eq.s32.totalorder %s24, 0
    %p284 = por %p282, %p283
    %s286 = sadd.s32 %s285, 1
    %p289 = scmp.eq.s32.totalorder %s18, 3
    %p290 = scmp.ne.s32.totalorder %s285, %s287
    %p291 = scmp.eq.s32.totalorder %s18, 0
    %p292 = por %p290, %p291
    %p293 = scmp.ne.s32.totalorder %s285, %s287
    %p294 = scmp.eq.s32.totalorder %s23, 3
    %p295 = por %p293, %p294
    %p296 = scmp.ne.s32.totalorder %s287, %s288
    %p297 = scmp.eq.s32.totalorder %s23, 0
    %p298 = por %p296, %p297
    %p299 = scmp.ne.s32.totalorder %s287, %s288
    %p300 = scmp.eq.s32.totalorder %s24, 3
    %p301 = por %p299, %p300
    %p303 = scmp.ne.s32.totalorder %s288, %s302
    %p304 = scmp.eq.s32.totalorder %s24, 0
    %p305 = por %p303, %p304
    %s307 = sadd.s32 %s306, 1
    %p310 = scmp.eq.s32.totalorder %s18, 3
    %p311 = scmp.ne.s32.totalorder %s306, %s308
    %p312 = scmp.eq.s32.totalorder %s18, 0
    %p313 = por %p311, %p312
    %p314 = scmp.ne.s32.totalorder %s306, %s308
    %p315 = scmp.eq.s32.totalorder %s23, 3
    %p316 = por %p314, %p315
    %p317 = scmp.ne.s32.totalorder %s308, %s309
    %p318 = scmp.eq.s32.totalorder %s23, 0
    %p319 = por %p317, %p318
    %p320 = scmp.ne.s32.totalorder %s308, %s309
    %p321 = scmp.eq.s32.totalorder %s24, 3
    %p322 = por %p320, %p321
    %p324 = scmp.ne.s32.totalorder %s309, %s323
    %p325 = scmp.eq.s32.totalorder %s24, 0
    %p326 = por %p324, %p325
    %s327 = ssub.s32 %s25, %s37
    %s328 = ssub.s32 %s26, %s33
    %s329 = sor.u32 %s327, %s328
    %p330 = scmp.eq.s32.totalorder %s329, 0
    %s332 = sadd.s32 %s331, 1
    %s333 = scalar_select %p330, %s331, %s332
    %p336 = pneg %p330
    %p337 = scmp.eq.s32.totalorder %s18, 3
    %p338 = por %p336, %p337
    %p339 = scmp.ne.s32.totalorder %s331, %s334
    %p340 = scmp.eq.s32.totalorder %s18, 0
    %p341 = por %p339, %p340
    %p342 = scmp.ne.s32.totalorder %s331, %s334
    %p343 = scmp.eq.s32.totalorder %s23, 3
    %p344 = por %p342, %p343
    %p345 = scmp.ne.s32.totalorder %s334, %s335
    %p346 = scmp.eq.s32.totalorder %s23, 0
    %p347 = por %p345, %p346
    %p348 = scmp.ne.s32.totalorder %s334, %s335
    %p349 = scmp.eq.s32.totalorder %s24, 3
    %p350 = por %p348, %p349
    %p352 = scmp.ne.s32.totalorder %s335, %s351
    %p353 = scmp.eq.s32.totalorder %s24, 0
    %p354 = por %p352, %p353
    %p355 = scmp.le.s32.totalorder 1, %s18
    %p356 = scmp.lt.s32.totalorder %s18, 5
    %p357 = pnand %p355, %p356
    %p358 = pneg %p357
    // Predicated region
    $region9: #{bottleneck_forward.1} parent=5 // pred_check
      _
    $region10: #{bottleneck_forward.1} parent=5 // pred_check_branch
      %360 = sbr.rel (%p357) target = $region12
    $region11: #{bottleneck_forward.1} parent=5 // pred_region
      %s361 = ssub.s32 %s18, 1
      // Predicated region
      $region13: #{bottleneck_forward.1} parent=11 // pred_check
        %p362 = pneg %p151
      $region14: #{bottleneck_forward.1} parent=11 // pred_check_branch
        %364 = sbr.rel (%p362) target = $region16
      $region15: #{bottleneck_forward.1} parent=11 // pred_region
        _
      $region16: #{bottleneck_forward.1} parent=11 // pred_fallthru
        _
      // Predicated region
      $region17: #{bottleneck_forward.1} parent=11 // pred_check
        %p365 = pneg %p172
      $region18: #{bottleneck_forward.1} parent=11 // pred_check_branch
        %367 = sbr.rel (%p365) target = $region20
      $region19: #{bottleneck_forward.1} parent=11 // pred_region
        _
      $region20: #{bottleneck_forward.1} parent=11 // pred_fallthru
        _
      // Predicated region
      $region21: #{bottleneck_forward.1} parent=11 // pred_check
        %p368 = pneg %p193
      $region22: #{bottleneck_forward.1} parent=11 // pred_check_branch
        %370 = sbr.rel (%p368) target = $region24
      $region23: #{bottleneck_forward.1} parent=11 // pred_region
        _
      $region24: #{bottleneck_forward.1} parent=11 // pred_fallthru
        _
      // Predicated region
      $region25: #{bottleneck_forward.1} parent=11 // pred_check
        %p371 = pneg %p214
      $region26: #{bottleneck_forward.1} parent=11 // pred_check_branch
        %373 = sbr.rel (%p371) target = $region28
      $region27: #{bottleneck_forward.1} parent=11 // pred_region
        _
      $region28: #{bottleneck_forward.1} parent=11 // pred_fallthru
        _
      // Predicated region
      $region29: #{bottleneck_forward.1} parent=11 // pred_check
        %p374 = pneg %p235
      $region30: #{bottleneck_forward.1} parent=11 // pred_check_branch
        %376 = sbr.rel (%p374) target = $region32
      $region31: #{bottleneck_forward.1} parent=11 // pred_region
        _
      $region32: #{bottleneck_forward.1} parent=11 // pred_fallthru
        _
      // Predicated region
      $region33: #{bottleneck_forward.1} parent=11 // pred_check
        %p377 = pneg %p256
      $region34: #{bottleneck_forward.1} parent=11 // pred_check_branch
        %379 = sbr.rel (%p377) target = $region36
      $region35: #{bottleneck_forward.1} parent=11 // pred_region
        _
      $region36: #{bottleneck_forward.1} parent=11 // pred_fallthru
        _
      // Predicated region
      $region37: #{bottleneck_forward.1} parent=11 // pred_check
        %p380 = pneg %p277
      $region38: #{bottleneck_forward.1} parent=11 // pred_check_branch
        %382 = sbr.rel (%p380) target = $region40
      $region39: #{bottleneck_forward.1} parent=11 // pred_region
        _
      $region40: #{bottleneck_forward.1} parent=11 // pred_fallthru
        _
      // Predicated region
      $region41: #{bottleneck_forward.1} parent=11 // pred_check
        %p383 = pneg %p298
      $region42: #{bottleneck_forward.1} parent=11 // pred_check_branch
        %385 = sbr.rel (%p383) target = $region44
      $region43: #{bottleneck_forward.1} parent=11 // pred_region
        _
      $region44: #{bottleneck_forward.1} parent=11 // pred_fallthru
        _
      // Predicated region
      $region45: #{bottleneck_forward.1} parent=11 // pred_check
        %p386 = pneg %p319
      $region46: #{bottleneck_forward.1} parent=11 // pred_check_branch
        %388 = sbr.rel (%p386) target = $region48
      $region47: #{bottleneck_forward.1} parent=11 // pred_region
        _
      $region48: #{bottleneck_forward.1} parent=11 // pred_fallthru
        _
    $region12: #{bottleneck_forward.1} parent=5 // pred_fallthru
      _
    %p389 = scmp.lt.s32.totalorder %s18, 4
    // Predicated region
    $region49: #{bottleneck_forward.1} parent=5 // pred_check
      %p390 = pneg %p389
    $region50: #{bottleneck_forward.1} parent=5 // pred_check_branch
      %392 = sbr.rel (%p390) target = $region52
    $region51: #{bottleneck_forward.1} parent=5 // pred_region
      // Predicated region
      $region53: #{bottleneck_forward.1} parent=51 // pred_check
        %p393 = pneg %p52
      $region54: #{bottleneck_forward.1} parent=51 // pred_check_branch
        %395 = sbr.rel (%p393) target = $region56
      $region55: #{bottleneck_forward.1} parent=51 // pred_region
        %s396 = smul.u32 16, %s26
        %p397 = scmp.lt.s32.totalorder %s25, 1
        %s398 = scalar_select %p397, %s25, 1
        %p399 = scmp.lt.s32.totalorder %s396, 31
        %s400 = scalar_select %p399, %s396, 31
        %s401 = smul.addr %s398, 32
        %s402 = sadd.s32 %s400, %s401
        %s403 = smul.addr %s402, 4
        %s404 = scalar_lea.vmem %s0, %s403
        %s405 = smul.u32 16, %s26
      $region56: #{bottleneck_forward.1} parent=51 // pred_fallthru
        _
      // Predicated region
      $region57: #{bottleneck_forward.1} parent=51 // pred_check
        %p406 = pneg %p88
      $region58: #{bottleneck_forward.1} parent=51 // pred_check_branch
        %408 = sbr.rel (%p406) target = $region60
      $region59: #{bottleneck_forward.1} parent=51 // pred_region
        %s409 = smul.u32 %s26, 8
        %s410 = ssub.s32 %s409, 1
        %p411 = scmp.gt.s32.totalorder %s410, 0
        %s412 = scalar_select %p411, %s410, 0
        %s413 = smul.u32 2, %s412
        %p414 = scmp.lt.s32.totalorder %s25, 1
        %s415 = scalar_select %p414, %s25, 1
        %p416 = scmp.lt.s32.totalorder %s413, 31
        %s417 = scalar_select %p416, %s413, 31
        %s418 = smul.addr %s415, 32
        %s419 = sadd.s32 %s417, %s418
        %s420 = smul.addr %s419, 4
        %s421 = scalar_lea.vmem %s1, %s420
        %s422 = smul.u32 %s26, 8
        %s423 = ssub.s32 %s422, 1
        %p424 = scmp.gt.s32.totalorder %s423, 0
        %s425 = scalar_select %p424, %s423, 0
        %s426 = smul.u32 2, %s425
      $region60: #{bottleneck_forward.1} parent=51 // pred_fallthru
        _
      // Predicated region
      $region61: #{bottleneck_forward.1} parent=51 // pred_check
        %p427 = pneg %p124
      $region62: #{bottleneck_forward.1} parent=51 // pred_check_branch
        %429 = sbr.rel (%p427) target = $region64
      $region63: #{bottleneck_forward.1} parent=51 // pred_region
        %s430 = smul.u32 %s26, 8
        %s431 = sadd.s32 %s430, 8
        %p432 = scmp.lt.s32.totalorder %s431, 15
        %s433 = scalar_select %p432, %s431, 15
        %s434 = smul.u32 2, %s433
        %p435 = scmp.lt.s32.totalorder %s25, 1
        %s436 = scalar_select %p435, %s25, 1
        %p437 = scmp.lt.s32.totalorder %s434, 31
        %s438 = scalar_select %p437, %s434, 31
        %s439 = smul.addr %s436, 32
        %s440 = sadd.s32 %s438, %s439
        %s441 = smul.addr %s440, 4
        %s442 = scalar_lea.vmem %s2, %s441
        %s443 = smul.u32 %s26, 8
        %s444 = sadd.s32 %s443, 8
        %p445 = scmp.lt.s32.totalorder %s444, 15
        %s446 = scalar_select %p445, %s444, 15
        %s447 = smul.u32 2, %s446
      $region64: #{bottleneck_forward.1} parent=51 // pred_fallthru
        _
    $region52: #{bottleneck_forward.1} parent=5 // pred_fallthru
      _
    %p448 = scmp.le.s32.totalorder 1, %s18
    %p449 = scmp.lt.s32.totalorder %s18, 5
    %p450 = pnand %p448, %p449
    %p451 = pneg %p450
    // Predicated region
    $region65: #{bottleneck_forward.1} parent=5 // pred_check
      _
    $region66: #{bottleneck_forward.1} parent=5 // pred_check_branch
      %453 = sbr.rel (%p450) target = $region68
    $region67: #{bottleneck_forward.1} parent=5 // pred_region
      %s454 = ssub.s32 %s18, 1
      %s455 = smul.u32 16, %s28
      %p456 = scmp.lt.s32.totalorder %s27, 1
      %s457 = scalar_select %p456, %s27, 1
      %p458 = scmp.lt.s32.totalorder %s455, 31
      %s459 = scalar_select %p458, %s455, 31
      %s460 = smul.addr %s457, 32
      %s461 = sadd.s32 %s459, %s460
      %s462 = smul.addr %s461, 4
      %s463 = scalar_lea.vmem %s0, %s462
      %p464 = pneg %p58
      %p465 = pneg %p55
      %s466 = smul.u32 %s28, 8
      %s467 = ssub.s32 %s466, 1
      %p468 = scmp.gt.s32.totalorder %s467, 0
      %s469 = scalar_select %p468, %s467, 0
      %s470 = smul.u32 2, %s469
      %p471 = scmp.lt.s32.totalorder %s27, 1
      %s472 = scalar_select %p471, %s27, 1
      %p473 = scmp.lt.s32.totalorder %s470, 31
      %s474 = scalar_select %p473, %s470, 31
      %s475 = smul.addr %s472, 32
      %s476 = sadd.s32 %s474, %s475
      %s477 = smul.addr %s476, 4
      %s478 = scalar_lea.vmem %s1, %s477
      %p479 = pneg %p94
      %p480 = pneg %p91
      %s481 = smul.u32 %s28, 8
      %s482 = sadd.s32 %s481, 8
      %p483 = scmp.lt.s32.totalorder %s482, 15
      %s484 = scalar_select %p483, %s482, 15
      %s485 = smul.u32 2, %s484
      %p486 = scmp.lt.s32.totalorder %s27, 1
      %s487 = scalar_select %p486, %s27, 1
      %p488 = scmp.lt.s32.totalorder %s485, 31
      %s489 = scalar_select %p488, %s485, 31
      %s490 = smul.addr %s487, 32
      %s491 = sadd.s32 %s489, %s490
      %s492 = smul.addr %s491, 4
      %s493 = scalar_lea.vmem %s2, %s492
      %p494 = pneg %p130
      %p495 = pneg %p127
      %p496 = pneg %p151
      %p497 = pneg %p148
      %p498 = pneg %p172
      %p499 = pneg %p169
      %p500 = pneg %p193
      %p501 = pneg %p190
      %p502 = pneg %p214
      %p503 = pneg %p211
      %p504 = pneg %p235
      %p505 = pneg %p232
      %p506 = pneg %p256
      %p507 = pneg %p253
      %p508 = pneg %p277
      %p509 = pneg %p274
      %p510 = pneg %p298
      %p511 = pneg %p295
      %p512 = pneg %p319
      %p513 = pneg %p316
      %p514 = pneg %p347
      %p515 = pneg %p344
      %s516 = smul.u32 16, %s28
      %p517 = scmp.lt.s32.totalorder %s27, 1
      %s518 = scalar_select %p517, %s27, 1
      %p519 = scmp.lt.s32.totalorder %s516, 31
      %s520 = scalar_select %p519, %s516, 31
      %s521 = smul.addr %s518, 32
      %s522 = sadd.s32 %s520, %s521
      %s523 = smul.addr %s522, 8
      %s524 = scalar_lea.vmem %s12, %s523
      %s525 = smul.u32 16, %s28
      %p526 = scmp.lt.s32.totalorder %s27, 1
      %s527 = scalar_select %p526, %s27, 1
      %p528 = scmp.lt.s32.totalorder %s525, 31
      %s529 = scalar_select %p528, %s525, 31
      %s530 = smul.addr %s527, 32
      %s531 = sadd.s32 %s529, %s530
      %s532 = smul.addr %s531, 4
      %s533 = scalar_lea.vmem %s0, %s532
      %s534 = smul.u32 16, %s28
      %s535 = smul.u32 %s28, 8
      %s536 = ssub.s32 %s535, 1
      %p537 = scmp.gt.s32.totalorder %s536, 0
      %s538 = scalar_select %p537, %s536, 0
      %s539 = smul.u32 2, %s538
      %p540 = scmp.lt.s32.totalorder %s27, 1
      %s541 = scalar_select %p540, %s27, 1
      %p542 = scmp.lt.s32.totalorder %s539, 31
      %s543 = scalar_select %p542, %s539, 31
      %s544 = smul.addr %s541, 32
      %s545 = sadd.s32 %s543, %s544
      %s546 = smul.addr %s545, 4
      %s547 = scalar_lea.vmem %s1, %s546
      %s548 = smul.u32 %s28, 8
      %s549 = ssub.s32 %s548, 1
      %p550 = scmp.gt.s32.totalorder %s549, 0
      %s551 = scalar_select %p550, %s549, 0
      %s552 = smul.u32 2, %s551
      %s553 = smul.u32 %s28, 8
      %s554 = sadd.s32 %s553, 8
      %p555 = scmp.lt.s32.totalorder %s554, 15
      %s556 = scalar_select %p555, %s554, 15
      %s557 = smul.u32 2, %s556
      %p558 = scmp.lt.s32.totalorder %s27, 1
      %s559 = scalar_select %p558, %s27, 1
      %p560 = scmp.lt.s32.totalorder %s557, 31
      %s561 = scalar_select %p560, %s557, 31
      %s562 = smul.addr %s559, 32
      %s563 = sadd.s32 %s561, %s562
      %s564 = smul.addr %s563, 4
      %s565 = scalar_lea.vmem %s2, %s564
      %s566 = smul.u32 %s28, 8
      %s567 = sadd.s32 %s566, 8
      %p568 = scmp.lt.s32.totalorder %s567, 15
      %s569 = scalar_select %p568, %s567, 15
      %s570 = smul.u32 2, %s569
      %s571 = smul.u32 16, %s28
      %p572 = scmp.lt.s32.totalorder %s27, 1
      %s573 = scalar_select %p572, %s27, 1
      %p574 = scmp.lt.s32.totalorder %s571, 31
      %s575 = scalar_select %p574, %s571, 31
      %s576 = smul.addr %s573, 32
      %s577 = sadd.s32 %s575, %s576
      %s578 = smul.addr %s577, 8
      %s579 = scalar_lea.vmem %s12, %s578
      %s580 = smul.u32 16, %s28
      %v584 = vld [vmem:[%s547] sm:$0xf]
      %v585 = vld [vmem:[%s547 + $0x4] sm:$0xf]
      %v586 = vld [vmem:[%s533] sm:$0xf]
      %v587 = vld [vmem:[%s533 + $0x4] sm:$0xf]
      %v588 = vld [vmem:[%s533 + $0x8] sm:$0xf]
      %v589 = vld [vmem:[%s533 + $0xc] sm:$0xf]
      %v590 = vld [vmem:[%s533 + $0x10] sm:$0xf]
      %v591 = vld [vmem:[%s533 + $0x14] sm:$0xf]
      %v592 = vld [vmem:[%s533 + $0x18] sm:$0xf]
      %v593 = vld [vmem:[%s533 + $0x1c] sm:$0xf]
      %v594 = vld [vmem:[%s533 + $0x20] sm:$0xf]
      %v595 = vld [vmem:[%s533 + $0x24] sm:$0xf]
      %v596 = vld [vmem:[%s533 + $0x28] sm:$0xf]
      %v597 = vld [vmem:[%s533 + $0x2c] sm:$0xf]
      %v598 = vld [vmem:[%s533 + $0x30] sm:$0xf]
      %v599 = vld [vmem:[%s533 + $0x34] sm:$0xf]
      %v600 = vld [vmem:[%s533 + $0x38] sm:$0xf]
      %v601 = vld [vmem:[%s533 + $0x3c] sm:$0xf]
      %v602 = vld [vmem:[%s565] sm:$0xf]
      %v603 = vld [vmem:[%s565 + $0x4] sm:$0xf]
      %v606 = vunpack.c.l.b16 %v584
      %v607 = vunpack.c.l.b16 %v585
      %v608 = vpack.c.b16 %v607, %v606
      %v625 = vunpack.c.l.b16 %v586
      %v626 = vunpack.c.l.b16 %v587
      %v627 = vunpack.c.l.b16 %v588
      %v628 = vunpack.c.l.b16 %v589
      %v629 = vunpack.c.l.b16 %v590
      %v630 = vunpack.c.l.b16 %v591
      %v631 = vunpack.c.l.b16 %v592
      %v632 = vunpack.c.l.b16 %v593
      %v633 = vunpack.c.l.b16 %v594
      %v634 = vunpack.c.l.b16 %v595
      %v635 = vunpack.c.l.b16 %v596
      %v636 = vunpack.c.l.b16 %v597
      %v637 = vunpack.c.l.b16 %v598
      %v638 = vunpack.c.l.b16 %v599
      %v639 = vunpack.c.l.b16 %v600
      %v640 = vunpack.c.l.b16 %v601
      %v641 = vpack.c.b16 %v626, %v625
      %v642 = vpack.c.b16 %v628, %v627
      %v643 = vpack.c.b16 %v630, %v629
      %v644 = vpack.c.b16 %v632, %v631
      %v645 = vpack.c.b16 %v634, %v633
      %v646 = vpack.c.b16 %v636, %v635
      %v647 = vpack.c.b16 %v638, %v637
      %v648 = vpack.c.b16 %v640, %v639
      %v651 = vunpack.c.l.b16 %v602
      %v652 = vunpack.c.l.b16 %v603
      %v653 = vpack.c.b16 %v652, %v651
      %v654 = vld [vmem:[%s3] sm:$0xf]
      %v655 = vld [vmem:[%s3 + $0x4] sm:$0xf]
      %v658 = vunpack.c.l.b16 %v654
      %v659 = vunpack.c.l.b16 %v655
      %v660 = vpack.c.b16 %v659, %v658
      %vm662 = vcmask 130048
      %v664 = vsel %vm662, %v608, 0
      %v667 = vsel %vm662, %v641, 0
      %v670 = vsel %vm662, %v642, 0
      %v673 = vsel %vm662, %v643, 0
      %v676 = vsel %vm662, %v644, 0
      %v679 = vsel %vm662, %v645, 0
      %v682 = vsel %vm662, %v646, 0
      %v685 = vsel %vm662, %v647, 0
      %v688 = vsel %vm662, %v648, 0
      %v691 = vsel %vm662, %v653, 0
      %693 = vmatprep.subr.bf16.mxu0 0
      %694 = vmatpush1.bf16.msra.mxu0 %v660
      %695 = vmatprep.subr.bf16.mxu0 0
      %696 = vmatpush1.bf16.msra.mxu0 0
      %697 = vmatprep.subr.bf16.mxu0 0
      %698 = vmatpush1.bf16.msra.mxu0 0
      %699 = vmatprep.subr.bf16.mxu0 0
      %700 = vmatpush1.bf16.msra.mxu0 0
      %701 = vmatprep.subr.bf16.mxu0 0
      %702 = vmatpush1.bf16.msra.mxu0 0
      %703 = vmatprep.subr.bf16.mxu0 0
      %704 = vmatpush1.bf16.msra.mxu0 0
      %705 = vmatprep.subr.bf16.mxu0 0
      %706 = vmatpush1.bf16.msra.mxu0 0
      %707 = vmatprep.subr.bf16.mxu0 0
      %708 = vmatpush1.bf16.msra.mxu0 0
      %709 = vmatprep.subr.bf16.mxu0 0
      %710 = vmatpush1.bf16.msra.mxu0 0
      %711 = vmatprep.subr.bf16.mxu0 0
      %712 = vmatpush1.bf16.msra.mxu0 0
      %713 = vmatprep.subr.bf16.mxu0 0
      %714 = vmatpush1.bf16.msra.mxu0 0
      %715 = vmatprep.subr.bf16.mxu0 0
      %716 = vmatpush1.bf16.msra.mxu0 0
      %717 = vmatprep.subr.bf16.mxu0 0
      %718 = vmatpush1.bf16.msra.mxu0 0
      %719 = vmatprep.subr.bf16.mxu0 0
      %720 = vmatpush1.bf16.msra.mxu0 0
      %721 = vmatprep.subr.bf16.mxu0 0
      %722 = vmatpush1.bf16.msra.mxu0 0
      %723 = vmatprep.subr.bf16.mxu0 0
      %724 = vmatpush1.bf16.msra.mxu0 0
      %725 = vmatprep.mubr.bf16.mxu0 0
      %726 = vmatmul.mubr.bf16.gmra.mrb[0].mxu0 %v664
      %v727 = vpop.f32.mrb[0].mxu0
      %v728 = vadd.f32 0.0, %v727
      %v729 = vpop.f32.mrb[0].mxu0
      %v730 = vpop.f32.mrb[0].mxu0
      %v731 = vadd.f32 0.0, %v730
      %v732 = vpop.f32.mrb[0].mxu0
      %733 = vmatprep.mubr.bf16.mxu0 0
      %734 = vmatmul.mubr.bf16.gmra.mrb[0].mxu0 %v667
      %v735 = vpop.f32.mrb[0].mxu0
      %v736 = vadd.f32 0.0, %v735
      %v737 = vpop.f32.mrb[0].mxu0
      %v738 = vpop.f32.mrb[0].mxu0
      %v739 = vadd.f32 0.0, %v738
      %v740 = vpop.f32.mrb[0].mxu0
      %741 = vmatprep.mubr.bf16.mxu0 0
      %742 = vmatmul.mubr.bf16.gmra.mrb[0].mxu0 %v670
      %v743 = vpop.f32.mrb[0].mxu0
      %v744 = vadd.f32 0.0, %v743
      %v745 = vpop.f32.mrb[0].mxu0
      %v746 = vpop.f32.mrb[0].mxu0
      %v747 = vadd.f32 0.0, %v746
      %v748 = vpop.f32.mrb[0].mxu0
      %749 = vmatprep.mubr.bf16.mxu0 0
      %750 = vmatmul.mubr.bf16.gmra.mrb[0].mxu0 %v673
      %v751 = vpop.f32.mrb[0].mxu0
      %v752 = vadd.f32 0.0, %v751
      %v753 = vpop.f32.mrb[0].mxu0
      %v754 = vpop.f32.mrb[0].mxu0
      %v755 = vadd.f32 0.0, %v754
      %v756 = vpop.f32.mrb[0].mxu0
      %757 = vmatprep.mubr.bf16.mxu0 0
      %758 = vmatmul.mubr.bf16.gmra.mrb[0].mxu0 %v676
      %v759 = vpop.f32.mrb[0].mxu0
      %v760 = vadd.f32 0.0, %v759
      %v761 = vpop.f32.mrb[0].mxu0
      %v762 = vpop.f32.mrb[0].mxu0
      %v763 = vadd.f32 0.0, %v762
      %v764 = vpop.f32.mrb[0].mxu0
      %765 = vmatprep.mubr.bf16.mxu0 0
      %766 = vmatmul.mubr.bf16.gmra.mrb[0].mxu0 %v679
      %v767 = vpop.f32.mrb[0].mxu0
      %v768 = vadd.f32 0.0, %v767
      %v769 = vpop.f32.mrb[0].mxu0
      %v770 = vpop.f32.mrb[0].mxu0
      %v771 = vadd.f32 0.0, %v770
      %v772 = vpop.f32.mrb[0].mxu0
      %773 = vmatprep.mubr.bf16.mxu0 0
      %774 = vmatmul.mubr.bf16.gmra.mrb[0].mxu0 %v682
      %v775 = vpop.f32.mrb[0].mxu0
      %v776 = vadd.f32 0.0, %v775
      %v777 = vpop.f32.mrb[0].mxu0
      %v778 = vpop.f32.mrb[0].mxu0
      %v779 = vadd.f32 0.0, %v778
      %v780 = vpop.f32.mrb[0].mxu0
      %781 = vmatprep.mubr.bf16.mxu0 0
      %782 = vmatmul.mubr.bf16.gmra.mrb[0].mxu0 %v685
      %v783 = vpop.f32.mrb[0].mxu0
      %v784 = vadd.f32 0.0, %v783
      %v785 = vpop.f32.mrb[0].mxu0
      %v786 = vpop.f32.mrb[0].mxu0
      %v787 = vadd.f32 0.0, %v786
      %v788 = vpop.f32.mrb[0].mxu0
      %789 = vmatprep.mubr.bf16.mxu0 0
      %790 = vmatmul.mubr.bf16.gmra.mrb[0].mxu0 %v688
      %v791 = vpop.f32.mrb[0].mxu0
      %v792 = vadd.f32 0.0, %v791
      %v793 = vpop.f32.mrb[0].mxu0
      %v794 = vpop.f32.mrb[0].mxu0
      %v795 = vadd.f32 0.0, %v794
      %v796 = vpop.f32.mrb[0].mxu0
      %797 = vmatprep.mubr.bf16.mxu0 0
      %798 = vmatmul.mubr.bf16.gmra.mrb[0].mxu0 %v691
      %v799 = vpop.f32.mrb[0].mxu0
      %v800 = vadd.f32 0.0, %v799
      %v801 = vpop.f32.mrb[0].mxu0
      %v802 = vpop.f32.mrb[0].mxu0
      %v803 = vadd.f32 0.0, %v802
      %v804 = vpop.f32.mrb[0].mxu0
      %805 = vdwg.mxu0
      %v806 = vld [vmem:[%s4] sm:$0x1]
      %v808 = vlaneseq
      %v809 = vshrl.u32 %v808, 7
      %v810 = vsub.s32 0, %v809
      %v811 = vrot.slane %v806, %v810
      %v813 = vmul.f32 %v728, %v811
      %v814 = vmul.f32 %v731, %v811
      %v815 = vmul.f32 %v736, %v811
      %v816 = vmul.f32 %v739, %v811
      %v817 = vmul.f32 %v744, %v811
      %v818 = vmul.f32 %v747, %v811
      %v819 = vmul.f32 %v752, %v811
      %v820 = vmul.f32 %v755, %v811
      %v821 = vmul.f32 %v760, %v811
      %v822 = vmul.f32 %v763, %v811
      %v823 = vmul.f32 %v768, %v811
      %v824 = vmul.f32 %v771, %v811
      %v825 = vmul.f32 %v776, %v811
      %v826 = vmul.f32 %v779, %v811
      %v827 = vmul.f32 %v784, %v811
      %v828 = vmul.f32 %v787, %v811
      %v829 = vmul.f32 %v792, %v811
      %v830 = vmul.f32 %v795, %v811
      %v831 = vmul.f32 %v800, %v811
      %v832 = vmul.f32 %v803, %v811
      %v833 = vld [vmem:[%s5] sm:$0x1]
      %v835 = vlaneseq
      %v836 = vshrl.u32 %v835, 7
      %v837 = vsub.s32 0, %v836
      %v838 = vrot.slane %v833, %v837
      %v840 = vadd.f32 %v813, %v838
      %v841 = vadd.f32 %v814, %v838
      %v842 = vadd.f32 %v815, %v838
      %v843 = vadd.f32 %v816, %v838
      %v844 = vadd.f32 %v817, %v838
      %v845 = vadd.f32 %v818, %v838
      %v846 = vadd.f32 %v819, %v838
      %v847 = vadd.f32 %v820, %v838
      %v848 = vadd.f32 %v821, %v838
      %v849 = vadd.f32 %v822, %v838
      %v850 = vadd.f32 %v823, %v838
      %v851 = vadd.f32 %v824, %v838
      %v852 = vadd.f32 %v825, %v838
      %v853 = vadd.f32 %v826, %v838
      %v854 = vadd.f32 %v827, %v838
      %v855 = vadd.f32 %v828, %v838
      %v856 = vadd.f32 %v829, %v838
      %v857 = vadd.f32 %v830, %v838
      %v858 = vadd.f32 %v831, %v838
      %v859 = vadd.f32 %v832, %v838
      %v860 = vmax.f32 %v840, 0.0
      %v861 = vmax.f32 %v841, 0.0
      %v862 = vmax.f32 %v842, 0.0
      %v863 = vmax.f32 %v843, 0.0
      %v864 = vmax.f32 %v844, 0.0
      %v865 = vmax.f32 %v845, 0.0
      %v866 = vmax.f32 %v846, 0.0
      %v867 = vmax.f32 %v847, 0.0
      %v868 = vmax.f32 %v848, 0.0
      %v869 = vmax.f32 %v849, 0.0
      %v870 = vmax.f32 %v850, 0.0
      %v871 = vmax.f32 %v851, 0.0
      %v872 = vmax.f32 %v852, 0.0
      %v873 = vmax.f32 %v853, 0.0
      %v874 = vmax.f32 %v854, 0.0
      %v875 = vmax.f32 %v855, 0.0
      %v876 = vmax.f32 %v856, 0.0
      %v877 = vmax.f32 %v857, 0.0
      %v878 = vmax.f32 %v858, 0.0
      %v879 = vmax.f32 %v859, 0.0
      %v880 = vpack.c.bf16 %v861, %v860
      %v881 = vpack.c.bf16 %v863, %v862
      %v882 = vpack.c.bf16 %v865, %v864
      %v883 = vpack.c.bf16 %v867, %v866
      %v884 = vpack.c.bf16 %v869, %v868
      %v885 = vpack.c.bf16 %v871, %v870
      %v886 = vpack.c.bf16 %v873, %v872
      %v887 = vpack.c.bf16 %v875, %v874
      %v888 = vpack.c.bf16 %v877, %v876
      %v889 = vpack.c.bf16 %v879, %v878
      %vm890 = vcmask 31744
      %891 = vst.msk [vmem:[#allocation2] sm:$0xff] %vm890, 0
      %892 = vst.msk [vmem:[#allocation2 + $0x58] sm:$0xff] %vm890, 0
      %p893 = scmp.gt.s32.totalorder %s28, 0
      %s894 = scalar_select %p893, 1, 0
      %v895 = vstv %s894
      %vm896 = vcmp.eq.s32.totalorder %v895, 1
      %v897 = vsel %vm896, %v880, 0
      %898 = vst.msk [vmem:[#allocation2 + $0x8] sm:$0xff] %vm890, %v897
      %899 = vst.msk [vmem:[#allocation2 + $0x10] sm:$0xff] %vm890, %v881
      %900 = vst.msk [vmem:[#allocation2 + $0x18] sm:$0xff] %vm890, %v882
      %901 = vst.msk [vmem:[#allocation2 + $0x20] sm:$0xff] %vm890, %v883
      %902 = vst.msk [vmem:[#allocation2 + $0x28] sm:$0xff] %vm890, %v884
      %903 = vst.msk [vmem:[#allocation2 + $0x30] sm:$0xff] %vm890, %v885
      %904 = vst.msk [vmem:[#allocation2 + $0x38] sm:$0xff] %vm890, %v886
      %905 = vst.msk [vmem:[#allocation2 + $0x40] sm:$0xff] %vm890, %v887
      %906 = vst.msk [vmem:[#allocation2 + $0x48] sm:$0xff] %vm890, %v888
      %p907 = scmp.lt.s32.totalorder %s28, 1
      %s908 = scalar_select %p907, 1, 0
      %v909 = vstv %s908
      %vm910 = vcmp.eq.s32.totalorder %v909, 1
      %v911 = vsel %vm910, %v889, 0
      %912 = vst.msk [vmem:[#allocation2 + $0x50] sm:$0xff] %vm890, %v911
      %v913 = vlaneseq
      %v914 = vshrl.u32 %v913, 7
      %v915 = vadd.s32 %v914, 8
      %v916 = vadd.s32 %v914, 16
      %v917 = vadd.s32 %v914, 24
      %v918 = vadd.s32 %v914, 32
      %v919 = vadd.s32 %v914, 40
      %v920 = vadd.s32 %v914, 48
      %v921 = vadd.s32 %v914, 56
      %v922 = vadd.s32 %v914, 64
      %v923 = vadd.s32 %v914, 72
      %v924 = vadd.s32 %v914, 80
      %v925 = vadd.s32 %v914, 88
      %v926 = vadd.s32 %v914, 96
      %v927 = vadd.s32 %v914, 104
      %v928 = vadd.s32 %v914, 112
      %v929 = vadd.s32 %v914, 120
      %v930 = vand.u32 %v914, 15
      %v931 = vand.u32 %v915, 15
      %v932 = vand.u32 %v916, 15
      %v933 = vand.u32 %v917, 15
      %v934 = vand.u32 %v918, 15
      %v935 = vand.u32 %v919, 15
      %v936 = vand.u32 %v920, 15
      %v937 = vand.u32 %v921, 15
      %v938 = vand.u32 %v922, 15
      %v939 = vand.u32 %v923, 15
      %v940 = vand.u32 %v924, 15
      %v941 = vand.u32 %v925, 15
      %v942 = vand.u32 %v926, 15
      %v943 = vand.u32 %v927, 15
      %v944 = vand.u32 %v928, 15
      %v945 = vand.u32 %v929, 15
      %vm946 = vcmp.ne.s32.totalorder %v930, 0
      %vm947 = vcmp.ne.s32.totalorder %v931, 0
      %vm948 = vcmp.ne.s32.totalorder %v932, 0
      %vm949 = vcmp.ne.s32.totalorder %v933, 0
      %vm950 = vcmp.ne.s32.totalorder %v934, 0
      %vm951 = vcmp.ne.s32.totalorder %v935, 0
      %vm952 = vcmp.ne.s32.totalorder %v936, 0
      %vm953 = vcmp.ne.s32.totalorder %v937, 0
      %vm954 = vcmp.ne.s32.totalorder %v938, 0
      %vm955 = vcmp.ne.s32.totalorder %v939, 0
      %vm956 = vcmp.ne.s32.totalorder %v940, 0
      %vm957 = vcmp.ne.s32.totalorder %v941, 0
      %vm958 = vcmp.ne.s32.totalorder %v942, 0
      %vm959 = vcmp.ne.s32.totalorder %v943, 0
      %vm960 = vcmp.ne.s32.totalorder %v944, 0
      %vm961 = vcmp.ne.s32.totalorder %v945, 0
      %v962 = vsel %vm946, 1, 0
      %v963 = vsel %vm947, 1, 0
      %v964 = vsel %vm948, 1, 0
      %v965 = vsel %vm949, 1, 0
      %v966 = vsel %vm950, 1, 0
      %v967 = vsel %vm951, 1, 0
      %v968 = vsel %vm952, 1, 0
      %v969 = vsel %vm953, 1, 0
      %v970 = vsel %vm954, 1, 0
      %v971 = vsel %vm955, 1, 0
      %v972 = vsel %vm956, 1, 0
      %v973 = vsel %vm957, 1, 0
      %v974 = vsel %vm958, 1, 0
      %v975 = vsel %vm959, 1, 0
      %v976 = vsel %vm960, 1, 0
      %v977 = vsel %vm961, 1, 0
      %vm978 = vcmp.eq.s32.totalorder %v962, 1
      %vm979 = vcmp.eq.s32.totalorder %v963, 1
      %vm980 = vcmp.eq.s32.totalorder %v964, 1
      %vm981 = vcmp.eq.s32.totalorder %v965, 1
      %vm982 = vcmp.eq.s32.totalorder %v966, 1
      %vm983 = vcmp.eq.s32.totalorder %v967, 1
      %vm984 = vcmp.eq.s32.totalorder %v968, 1
      %vm985 = vcmp.eq.s32.totalorder %v969, 1
      %vm986 = vcmp.eq.s32.totalorder %v970, 1
      %vm987 = vcmp.eq.s32.totalorder %v971, 1
      %vm988 = vcmp.eq.s32.totalorder %v972, 1
      %vm989 = vcmp.eq.s32.totalorder %v973, 1
      %vm990 = vcmp.eq.s32.totalorder %v974, 1
      %vm991 = vcmp.eq.s32.totalorder %v975, 1
      %vm992 = vcmp.eq.s32.totalorder %v976, 1
      %vm993 = vcmp.eq.s32.totalorder %v977, 1
      %vm994 = vcmp.ne.s32.totalorder %v930, 15
      %vm995 = vcmp.ne.s32.totalorder %v931, 15
      %vm996 = vcmp.ne.s32.totalorder %v932, 15
      %vm997 = vcmp.ne.s32.totalorder %v933, 15
      %vm998 = vcmp.ne.s32.totalorder %v934, 15
      %vm999 = vcmp.ne.s32.totalorder %v935, 15
      %vm1000 = vcmp.ne.s32.totalorder %v936, 15
      %vm1001 = vcmp.ne.s32.totalorder %v937, 15
      %vm1002 = vcmp.ne.s32.totalorder %v938, 15
      %vm1003 = vcmp.ne.s32.totalorder %v939, 15
      %vm1004 = vcmp.ne.s32.totalorder %v940, 15
      %vm1005 = vcmp.ne.s32.totalorder %v941, 15
      %vm1006 = vcmp.ne.s32.totalorder %v942, 15
      %vm1007 = vcmp.ne.s32.totalorder %v943, 15
      %vm1008 = vcmp.ne.s32.totalorder %v944, 15
      %vm1009 = vcmp.ne.s32.totalorder %v945, 15
      %v1010 = vsel %vm994, 1, 0
      %v1011 = vsel %vm995, 1, 0
      %v1012 = vsel %vm996, 1, 0
      %v1013 = vsel %vm997, 1, 0
      %v1014 = vsel %vm998, 1, 0
      %v1015 = vsel %vm999, 1, 0
      %v1016 = vsel %vm1000, 1, 0
      %v1017 = vsel %vm1001, 1, 0
      %v1018 = vsel %vm1002, 1, 0
      %v1019 = vsel %vm1003, 1, 0
      %v1020 = vsel %vm1004, 1, 0
      %v1021 = vsel %vm1005, 1, 0
      %v1022 = vsel %vm1006, 1, 0
      %v1023 = vsel %vm1007, 1, 0
      %v1024 = vsel %vm1008, 1, 0
      %v1025 = vsel %vm1009, 1, 0
      %vm1026 = vcmp.eq.s32.totalorder %v1010, 1
      %vm1027 = vcmp.eq.s32.totalorder %v1011, 1
      %vm1028 = vcmp.eq.s32.totalorder %v1012, 1
      %vm1029 = vcmp.eq.s32.totalorder %v1013, 1
      %vm1030 = vcmp.eq.s32.totalorder %v1014, 1
      %vm1031 = vcmp.eq.s32.totalorder %v1015, 1
      %vm1032 = vcmp.eq.s32.totalorder %v1016, 1
      %vm1033 = vcmp.eq.s32.totalorder %v1017, 1
      %vm1034 = vcmp.eq.s32.totalorder %v1018, 1
      %vm1035 = vcmp.eq.s32.totalorder %v1019, 1
      %vm1036 = vcmp.eq.s32.totalorder %v1020, 1
      %vm1037 = vcmp.eq.s32.totalorder %v1021, 1
      %vm1038 = vcmp.eq.s32.totalorder %v1022, 1
      %vm1039 = vcmp.eq.s32.totalorder %v1023, 1
      %vm1040 = vcmp.eq.s32.totalorder %v1024, 1
      %vm1041 = vcmp.eq.s32.totalorder %v1025, 1
      %v1042 = vld [vmem:[#allocation2] sm:$0x80]
      %v1043 = vld [vmem:[#allocation2 + $0x8] sm:$0xff]
      %v1044 = vld [vmem:[#allocation2 + $0x10] sm:$0xff]
      %v1045 = vld [vmem:[#allocation2 + $0x18] sm:$0xff]
      %v1046 = vld [vmem:[#allocation2 + $0x20] sm:$0xff]
      %v1047 = vld [vmem:[#allocation2 + $0x28] sm:$0xff]
      %v1048 = vld [vmem:[#allocation2 + $0x30] sm:$0xff]
      %v1049 = vld [vmem:[#allocation2 + $0x38] sm:$0xff]
      %v1050 = vld [vmem:[#allocation2 + $0x40] sm:$0xff]
      %vm1051 = vmpackc.low %vm978, %vm978
      %vm1052 = vmpackc.low %vm979, %vm979
      %vm1053 = vmpackc.low %vm980, %vm980
      %vm1054 = vmpackc.low %vm981, %vm981
      %vm1055 = vmpackc.low %vm982, %vm982
      %vm1056 = vmpackc.low %vm983, %vm983
      %vm1057 = vmpackc.low %vm984, %vm984
      %vm1058 = vmpackc.low %vm985, %vm985
      %vm1059 = vmpackc.low %vm986, %vm986
      %vm1060 = vmpackc.low %vm987, %vm987
      %vm1061 = vmpackc.low %vm988, %vm988
      %vm1062 = vmpackc.low %vm989, %vm989
      %vm1063 = vmpackc.low %vm990, %vm990
      %vm1064 = vmpackc.low %vm991, %vm991
      %vm1065 = vmpackc.low %vm992, %vm992
      %vm1066 = vmpackc.low %vm993, %vm993
      %v1067 = vsel %vm1051, 65537, 0
      %v1068 = vsel %vm1052, 65537, 0
      %v1069 = vsel %vm1053, 65537, 0
      %v1070 = vsel %vm1054, 65537, 0
      %v1071 = vsel %vm1055, 65537, 0
      %v1072 = vsel %vm1056, 65537, 0
      %v1073 = vsel %vm1057, 65537, 0
      %v1074 = vsel %vm1058, 65537, 0
      %v1075 = vsel %vm1059, 65537, 0
      %v1076 = vsel %vm1060, 65537, 0
      %v1077 = vsel %vm1061, 65537, 0
      %v1078 = vsel %vm1062, 65537, 0
      %v1079 = vsel %vm1063, 65537, 0
      %v1080 = vsel %vm1064, 65537, 0
      %v1081 = vsel %vm1065, 65537, 0
      %v1082 = vsel %vm1066, 65537, 0
      %v1083 = vunpack.c.l.b16 %v1067
      %v1084 = vunpack.c.l.b16 %v1068
      %v1085 = vunpack.c.l.b16 %v1069
      %v1086 = vunpack.c.l.b16 %v1070
      %v1087 = vunpack.c.l.b16 %v1071
      %v1088 = vunpack.c.l.b16 %v1072
      %v1089 = vunpack.c.l.b16 %v1073
      %v1090 = vunpack.c.l.b16 %v1074
      %v1091 = vunpack.c.l.b16 %v1075
      %v1092 = vunpack.c.l.b16 %v1076
      %v1093 = vunpack.c.l.b16 %v1077
      %v1094 = vunpack.c.l.b16 %v1078
      %v1095 = vunpack.c.l.b16 %v1079
      %v1096 = vunpack.c.l.b16 %v1080
      %v1097 = vunpack.c.l.b16 %v1081
      %v1098 = vunpack.c.l.b16 %v1082
      %v1099 = vpack.c.b16 %v1084, %v1083
      %v1100 = vpack.c.b16 %v1086, %v1085
      %v1101 = vpack.c.b16 %v1088, %v1087
      %v1102 = vpack.c.b16 %v1090, %v1089
      %v1103 = vpack.c.b16 %v1092, %v1091
      %v1104 = vpack.c.b16 %v1094, %v1093
      %v1105 = vpack.c.b16 %v1096, %v1095
      %v1106 = vpack.c.b16 %v1098, %v1097
      %vm1107 = vsmask.f32 7424
      %v1109 = vshll.u32 %v1099, 16
      %v1111 = vrot.slane %v1109, 1
      %v1112 = vshrl.u32 %v1099, 16
      %v1114 = vor.u32 %v1112, %v1111
      %v1116 = vshll.u32 %v1100, 16
      %v1118 = vrot.slane %v1116, 1
      %v1119 = vsel %vm1107, %v1114, %v1118
      %v1120 = vshrl.u32 %v1100, 16
      %v1122 = vor.u32 %v1120, %v1118
      %v1124 = vshll.u32 %v1101, 16
      %v1126 = vrot.slane %v1124, 1
      %v1127 = vsel %vm1107, %v1122, %v1126
      %v1128 = vshrl.u32 %v1101, 16
      %v1130 = vor.u32 %v1128, %v1126
      %v1132 = vshll.u32 %v1102, 16
      %v1134 = vrot.slane %v1132, 1
      %v1135 = vsel %vm1107, %v1130, %v1134
      %v1136 = vshrl.u32 %v1102, 16
      %v1138 = vor.u32 %v1136, %v1134
      %v1140 = vshll.u32 %v1103, 16
      %v1142 = vrot.slane %v1140, 1
      %v1143 = vsel %vm1107, %v1138, %v1142
      %v1144 = vshrl.u32 %v1103, 16
      %v1146 = vor.u32 %v1144, %v1142
      %v1148 = vshll.u32 %v1104, 16
      %v1150 = vrot.slane %v1148, 1
      %v1151 = vsel %vm1107, %v1146, %v1150
      %v1152 = vshrl.u32 %v1104, 16
      %v1154 = vor.u32 %v1152, %v1150
      %v1156 = vshll.u32 %v1105, 16
      %v1158 = vrot.slane %v1156, 1
      %v1159 = vsel %vm1107, %v1154, %v1158
      %v1160 = vshrl.u32 %v1105, 16
      %v1162 = vor.u32 %v1160, %v1158
      %v1164 = vshll.u32 %v1106, 16
      %v1166 = vrot.slane %v1164, 1
      %v1167 = vsel %vm1107, %v1162, %v1166
      %v1168 = vshrl.u32 %v1106, 16
      %v1170 = vor.u32 %v1168, %v1166
      %vm1171 = vcmp.ne.s16.totalorder %v1111, 0
      %vm1172 = vcmp.ne.s16.totalorder %v1119, 0
      %vm1173 = vcmp.ne.s16.totalorder %v1127, 0
      %vm1174 = vcmp.ne.s16.totalorder %v1135, 0
      %vm1175 = vcmp.ne.s16.totalorder %v1143, 0
      %vm1176 = vcmp.ne.s16.totalorder %v1151, 0
      %vm1177 = vcmp.ne.s16.totalorder %v1159, 0
      %vm1178 = vcmp.ne.s16.totalorder %v1167, 0
      %vm1179 = vcmp.ne.s16.totalorder %v1170, 0
      %v1180 = vsel %vm1171, %v1042, 0
      %v1181 = vsel %vm1172, %v1043, 0
      %v1182 = vsel %vm1173, %v1044, 0
      %v1183 = vsel %vm1174, %v1045, 0
      %v1184 = vsel %vm1175, %v1046, 0
      %v1185 = vsel %vm1176, %v1047, 0
      %v1186 = vsel %vm1177, %v1048, 0
      %v1187 = vsel %vm1178, %v1049, 0
      %v1188 = vsel %vm1179, %v1050, 0
      %vm1189 = vsmask.f32 256
      %v1191 = vshrl.u32 %v1180, 16
      %v1193 = vrot.slane %v1191, 7
      %v1195 = vshrl.u32 %v1181, 16
      %v1197 = vrot.slane %v1195, 7
      %v1198 = vshll.u32 %v1181, 16
      %v1200 = vor.u32 %v1197, %v1198
      %v1201 = vsel %vm1189, %v1193, %v1200
      %v1203 = vshrl.u32 %v1182, 16
      %v1205 = vrot.slane %v1203, 7
      %v1206 = vshll.u32 %v1182, 16
      %v1208 = vor.u32 %v1205, %v1206
      %v1209 = vsel %vm1189, %v1197, %v1208
      %v1211 = vshrl.u32 %v1183, 16
      %v1213 = vrot.slane %v1211, 7
      %v1214 = vshll.u32 %v1183, 16
      %v1216 = vor.u32 %v1213, %v1214
      %v1217 = vsel %vm1189, %v1205, %v1216
      %v1219 = vshrl.u32 %v1184, 16
      %v1221 = vrot.slane %v1219, 7
      %v1222 = vshll.u32 %v1184, 16
      %v1224 = vor.u32 %v1221, %v1222
      %v1225 = vsel %vm1189, %v1213, %v1224
      %v1227 = vshrl.u32 %v1185, 16
      %v1229 = vrot.slane %v1227, 7
      %v1230 = vshll.u32 %v1185, 16
      %v1232 = vor.u32 %v1229, %v1230
      %v1233 = vsel %vm1189, %v1221, %v1232
      %v1235 = vshrl.u32 %v1186, 16
      %v1237 = vrot.slane %v1235, 7
      %v1238 = vshll.u32 %v1186, 16
      %v1240 = vor.u32 %v1237, %v1238
      %v1241 = vsel %vm1189, %v1229, %v1240
      %v1243 = vshrl.u32 %v1187, 16
      %v1245 = vrot.slane %v1243, 7
      %v1246 = vshll.u32 %v1187, 16
      %v1248 = vor.u32 %v1245, %v1246
      %v1249 = vsel %vm1189, %v1237, %v1248
      %v1251 = vshrl.u32 %v1188, 16
      %v1253 = vrot.slane %v1251, 7
      %v1254 = vshll.u32 %v1188, 16
      %v1256 = vor.u32 %v1253, %v1254
      %v1257 = vsel %vm1189, %v1245, %v1256
      %1266 = vst.msk [vmem:[#allocation3] sm:$0xff] %vm890, %v1201
      %1267 = vst.msk [vmem:[#allocation3 + $0x8] sm:$0xff] %vm890, %v1209
      %1268 = vst.msk [vmem:[#allocation3 + $0x10] sm:$0xff] %vm890, %v1217
      %1269 = vst.msk [vmem:[#allocation3 + $0x18] sm:$0xff] %vm890, %v1225
      %1270 = vst.msk [vmem:[#allocation3 + $0x20] sm:$0xff] %vm890, %v1233
      %1271 = vst.msk [vmem:[#allocation3 + $0x28] sm:$0xff] %vm890, %v1241
      %1272 = vst.msk [vmem:[#allocation3 + $0x30] sm:$0xff] %vm890, %v1249
      %1273 = vst.msk [vmem:[#allocation3 + $0x38] sm:$0xff] %vm890, %v1257
      %v1274 = vld [vmem:[#allocation2 + $0x8] sm:$0xff]
      %v1275 = vld [vmem:[#allocation2 + $0x10] sm:$0xff]
      %v1276 = vld [vmem:[#allocation2 + $0x18] sm:$0xff]
      %v1277 = vld [vmem:[#allocation2 + $0x20] sm:$0xff]
      %v1278 = vld [vmem:[#allocation2 + $0x28] sm:$0xff]
      %v1279 = vld [vmem:[#allocation2 + $0x30] sm:$0xff]
      %v1280 = vld [vmem:[#allocation2 + $0x38] sm:$0xff]
      %v1281 = vld [vmem:[#allocation2 + $0x40] sm:$0xff]
      %1290 = vrot.lane.b32.xlu0 %v1274, 4
      %v1291 = vpop.permute.xlu0 %1290
      %1292 = vrot.lane.b32.xlu0 %v1275, 4
      %v1293 = vpop.permute.xlu0 %1292
      %1294 = vrot.lane.b32.xlu0 %v1276, 4
      %v1295 = vpop.permute.xlu0 %1294
      %1296 = vrot.lane.b32.xlu0 %v1277, 4
      %v1297 = vpop.permute.xlu0 %1296
      %1298 = vrot.lane.b32.xlu0 %v1278, 4
      %v1299 = vpop.permute.xlu0 %1298
      %1300 = vrot.lane.b32.xlu0 %v1279, 4
      %v1301 = vpop.permute.xlu0 %1300
      %1302 = vrot.lane.b32.xlu0 %v1280, 4
      %v1303 = vpop.permute.xlu0 %1302
      %1304 = vrot.lane.b32.xlu0 %v1281, 4
      %v1305 = vpop.permute.xlu0 %1304
      %vm1314 = vcmask 64544
      %1315 = vst.msk [vmem:[#allocation3] sm:$0xff] %vm1314, %v1291
      %1316 = vst.msk [vmem:[#allocation3 + $0x8] sm:$0xff] %vm1314, %v1293
      %1317 = vst.msk [vmem:[#allocation3 + $0x10] sm:$0xff] %vm1314, %v1295
      %1318 = vst.msk [vmem:[#allocation3 + $0x18] sm:$0xff] %vm1314, %v1297
      %1319 = vst.msk [vmem:[#allocation3 + $0x20] sm:$0xff] %vm1314, %v1299
      %1320 = vst.msk [vmem:[#allocation3 + $0x28] sm:$0xff] %vm1314, %v1301
      %1321 = vst.msk [vmem:[#allocation3 + $0x30] sm:$0xff] %vm1314, %v1303
      %1322 = vst.msk [vmem:[#allocation3 + $0x38] sm:$0xff] %vm1314, %v1305
      %v1323 = vld [vmem:[#allocation2 + $0x8] sm:$0xff]
      %v1324 = vld [vmem:[#allocation2 + $0x10] sm:$0xff]
      %v1325 = vld [vmem:[#allocation2 + $0x18] sm:$0xff]
      %v1326 = vld [vmem:[#allocation2 + $0x20] sm:$0xff]
      %v1327 = vld [vmem:[#allocation2 + $0x28] sm:$0xff]
      %v1328 = vld [vmem:[#allocation2 + $0x30] sm:$0xff]
      %v1329 = vld [vmem:[#allocation2 + $0x38] sm:$0xff]
      %v1330 = vld [vmem:[#allocation2 + $0x40] sm:$0xff]
      %v1331 = vld [vmem:[#allocation2 + $0x48] sm:$0x1]
      %vm1332 = vmpackc.low %vm1026, %vm1026
      %vm1333 = vmpackc.low %vm1027, %vm1027
      %vm1334 = vmpackc.low %vm1028, %vm1028
      %vm1335 = vmpackc.low %vm1029, %vm1029
      %vm1336 = vmpackc.low %vm1030, %vm1030
      %vm1337 = vmpackc.low %vm1031, %vm1031
      %vm1338 = vmpackc.low %vm1032, %vm1032
      %vm1339 = vmpackc.low %vm1033, %vm1033
      %vm1340 = vmpackc.low %vm1034, %vm1034
      %vm1341 = vmpackc.low %vm1035, %vm1035
      %vm1342 = vmpackc.low %vm1036, %vm1036
      %vm1343 = vmpackc.low %vm1037, %vm1037
      %vm1344 = vmpackc.low %vm1038, %vm1038
      %vm1345 = vmpackc.low %vm1039, %vm1039
      %vm1346 = vmpackc.low %vm1040, %vm1040
      %vm1347 = vmpackc.low %vm1041, %vm1041
      %v1348 = vsel %vm1332, 65537, 0
      %v1349 = vsel %vm1333, 65537, 0
      %v1350 = vsel %vm1334, 65537, 0
      %v1351 = vsel %vm1335, 65537, 0
      %v1352 = vsel %vm1336, 65537, 0
      %v1353 = vsel %vm1337, 65537, 0
      %v1354 = vsel %vm1338, 65537, 0
      %v1355 = vsel %vm1339, 65537, 0
      %v1356 = vsel %vm1340, 65537, 0
      %v1357 = vsel %vm1341, 65537, 0
      %v1358 = vsel %vm1342, 65537, 0
      %v1359 = vsel %vm1343, 65537, 0
      %v1360 = vsel %vm1344, 65537, 0
      %v1361 = vsel %vm1345, 65537, 0
      %v1362 = vsel %vm1346, 65537, 0
      %v1363 = vsel %vm1347, 65537, 0
      %v1364 = vunpack.c.l.b16 %v1348
      %v1365 = vunpack.c.l.b16 %v1349
      %v1366 = vunpack.c.l.b16 %v1350
      %v1367 = vunpack.c.l.b16 %v1351
      %v1368 = vunpack.c.l.b16 %v1352
      %v1369 = vunpack.c.l.b16 %v1353
      %v1370 = vunpack.c.l.b16 %v1354
      %v1371 = vunpack.c.l.b16 %v1355
      %v1372 = vunpack.c.l.b16 %v1356
      %v1373 = vunpack.c.l.b16 %v1357
      %v1374 = vunpack.c.l.b16 %v1358
      %v1375 = vunpack.c.l.b16 %v1359
      %v1376 = vunpack.c.l.b16 %v1360
      %v1377 = vunpack.c.l.b16 %v1361
      %v1378 = vunpack.c.l.b16 %v1362
      %v1379 = vunpack.c.l.b16 %v1363
      %v1380 = vpack.c.b16 %v1365, %v1364
      %v1381 = vpack.c.b16 %v1367, %v1366
      %v1382 = vpack.c.b16 %v1369, %v1368
      %v1383 = vpack.c.b16 %v1371, %v1370
      %v1384 = vpack.c.b16 %v1373, %v1372
      %v1385 = vpack.c.b16 %v1375, %v1374
      %v1386 = vpack.c.b16 %v1377, %v1376
      %v1387 = vpack.c.b16 %v1379, %v1378
      %v1389 = vshrl.u32 %v1380, 16
      %v1391 = vrot.slane %v1389, 7
      %v1392 = vshll.u32 %v1380, 16
      %v1394 = vor.u32 %v1391, %v1392
      %v1396 = vshrl.u32 %v1381, 16
      %v1398 = vrot.slane %v1396, 7
      %v1399 = vshll.u32 %v1381, 16
      %v1401 = vor.u32 %v1398, %v1399
      %v1402 = vsel %vm1189, %v1391, %v1401
      %v1404 = vshrl.u32 %v1382, 16
      %v1406 = vrot.slane %v1404, 7
      %v1407 = vshll.u32 %v1382, 16
      %v1409 = vor.u32 %v1406, %v1407
      %v1410 = vsel %vm1189, %v1398, %v1409
      %v1412 = vshrl.u32 %v1383, 16
      %v1414 = vrot.slane %v1412, 7
      %v1415 = vshll.u32 %v1383, 16
      %v1417 = vor.u32 %v1414, %v1415
      %v1418 = vsel %vm1189, %v1406, %v1417
      %v1420 = vshrl.u32 %v1384, 16
      %v1422 = vrot.slane %v1420, 7
      %v1423 = vshll.u32 %v1384, 16
      %v1425 = vor.u32 %v1422, %v1423
      %v1426 = vsel %vm1189, %v1414, %v1425
      %v1428 = vshrl.u32 %v1385, 16
      %v1430 = vrot.slane %v1428, 7
      %v1431 = vshll.u32 %v1385, 16
      %v1433 = vor.u32 %v1430, %v1431
      %v1434 = vsel %vm1189, %v1422, %v1433
      %v1436 = vshrl.u32 %v1386, 16
      %v1438 = vrot.slane %v1436, 7
      %v1439 = vshll.u32 %v1386, 16
      %v1441 = vor.u32 %v1438, %v1439
      %v1442 = vsel %vm1189, %v1430, %v1441
      %v1444 = vshrl.u32 %v1387, 16
      %v1446 = vrot.slane %v1444, 7
      %v1447 = vshll.u32 %v1387, 16
      %v1449 = vor.u32 %v1446, %v1447
      %v1450 = vsel %vm1189, %v1438, %v1449
      %vm1451 = vcmp.ne.s16.totalorder %v1394, 0
      %vm1452 = vcmp.ne.s16.totalorder %v1402, 0
      %vm1453 = vcmp.ne.s16.totalorder %v1410, 0
      %vm1454 = vcmp.ne.s16.totalorder %v1418, 0
      %vm1455 = vcmp.ne.s16.totalorder %v1426, 0
      %vm1456 = vcmp.ne.s16.totalorder %v1434, 0
      %vm1457 = vcmp.ne.s16.totalorder %v1442, 0
      %vm1458 = vcmp.ne.s16.totalorder %v1450, 0
      %vm1459 = vcmp.ne.s16.totalorder %v1446, 0
      %v1460 = vsel %vm1451, %v1323, 0
      %v1461 = vsel %vm1452, %v1324, 0
      %v1462 = vsel %vm1453, %v1325, 0
      %v1463 = vsel %vm1454, %v1326, 0
      %v1464 = vsel %vm1455, %v1327, 0
      %v1465 = vsel %vm1456, %v1328, 0
      %v1466 = vsel %vm1457, %v1329, 0
      %v1467 = vsel %vm1458, %v1330, 0
      %v1468 = vsel %vm1459, %v1331, 0
      %v1470 = vshrl.u32 %v1460, 16
      %v1472 = vshll.u32 %v1460, 16
      %v1474 = vrot.slane %v1472, 1
      %v1475 = vor.u32 %v1470, %v1474
      %v1477 = vshll.u32 %v1461, 16
      %v1479 = vrot.slane %v1477, 1
      %v1480 = vsel %vm1107, %v1475, %v1479
      %v1481 = vshrl.u32 %v1461, 16
      %v1483 = vor.u32 %v1481, %v1479
      %v1485 = vshll.u32 %v1462, 16
      %v1487 = vrot.slane %v1485, 1
      %v1488 = vsel %vm1107, %v1483, %v1487
      %v1489 = vshrl.u32 %v1462, 16
      %v1491 = vor.u32 %v1489, %v1487
      %v1493 = vshll.u32 %v1463, 16
      %v1495 = vrot.slane %v1493, 1
      %v1496 = vsel %vm1107, %v1491, %v1495
      %v1497 = vshrl.u32 %v1463, 16
      %v1499 = vor.u32 %v1497, %v1495
      %v1501 = vshll.u32 %v1464, 16
      %v1503 = vrot.slane %v1501, 1
      %v1504 = vsel %vm1107, %v1499, %v1503
      %v1505 = vshrl.u32 %v1464, 16
      %v1507 = vor.u32 %v1505, %v1503
      %v1509 = vshll.u32 %v1465, 16
      %v1511 = vrot.slane %v1509, 1
      %v1512 = vsel %vm1107, %v1507, %v1511
      %v1513 = vshrl.u32 %v1465, 16
      %v1515 = vor.u32 %v1513, %v1511
      %v1517 = vshll.u32 %v1466, 16
      %v1519 = vrot.slane %v1517, 1
      %v1520 = vsel %vm1107, %v1515, %v1519
      %v1521 = vshrl.u32 %v1466, 16
      %v1523 = vor.u32 %v1521, %v1519
      %v1525 = vshll.u32 %v1467, 16
      %v1527 = vrot.slane %v1525, 1
      %v1528 = vsel %vm1107, %v1523, %v1527
      %v1529 = vshrl.u32 %v1467, 16
      %v1531 = vor.u32 %v1529, %v1527
      %v1533 = vshll.u32 %v1468, 16
      %v1535 = vrot.slane %v1533, 1
      %v1536 = vsel %vm1107, %v1531, %v1535
      %1537 = vrot.lane.b32.xlu0 %v1480, 8
      %v1538 = vpop.permute.xlu0 %1537
      %1539 = vrot.lane.b32.xlu0 %v1488, 8
      %v1540 = vpop.permute.xlu0 %1539
      %1541 = vrot.lane.b32.xlu0 %v1496, 8
      %v1542 = vpop.permute.xlu0 %1541
      %1543 = vrot.lane.b32.xlu0 %v1504, 8
      %v1544 = vpop.permute.xlu0 %1543
      %1545 = vrot.lane.b32.xlu0 %v1512, 8
      %v1546 = vpop.permute.xlu0 %1545
      %1547 = vrot.lane.b32.xlu0 %v1520, 8
      %v1548 = vpop.permute.xlu0 %1547
      %1549 = vrot.lane.b32.xlu0 %v1528, 8
      %v1550 = vpop.permute.xlu0 %1549
      %1551 = vrot.lane.b32.xlu0 %v1536, 8
      %v1552 = vpop.permute.xlu0 %1551
      %vm1561 = vcmask 97344
      %1562 = vst.msk [vmem:[#allocation3] sm:$0xff] %vm1561, %v1538
      %1563 = vst.msk [vmem:[#allocation3 + $0x8] sm:$0xff] %vm1561, %v1540
      %1564 = vst.msk [vmem:[#allocation3 + $0x10] sm:$0xff] %vm1561, %v1542
      %1565 = vst.msk [vmem:[#allocation3 + $0x18] sm:$0xff] %vm1561, %v1544
      %1566 = vst.msk [vmem:[#allocation3 + $0x20] sm:$0xff] %vm1561, %v1546
      %1567 = vst.msk [vmem:[#allocation3 + $0x28] sm:$0xff] %vm1561, %v1548
      %1568 = vst.msk [vmem:[#allocation3 + $0x30] sm:$0xff] %vm1561, %v1550
      %1569 = vst.msk [vmem:[#allocation3 + $0x38] sm:$0xff] %vm1561, %v1552
      %v1570 = vld [vmem:[#allocation2 + $0x8] sm:$0x80]
      %v1571 = vld [vmem:[#allocation2 + $0x10] sm:$0xff]
      %v1572 = vld [vmem:[#allocation2 + $0x18] sm:$0xff]
      %v1573 = vld [vmem:[#allocation2 + $0x20] sm:$0xff]
      %v1574 = vld [vmem:[#allocation2 + $0x28] sm:$0xff]
      %v1575 = vld [vmem:[#allocation2 + $0x30] sm:$0xff]
      %v1576 = vld [vmem:[#allocation2 + $0x38] sm:$0xff]
      %v1577 = vld [vmem:[#allocation2 + $0x40] sm:$0xff]
      %v1578 = vld [vmem:[#allocation2 + $0x48] sm:$0xff]
      %v1579 = vsel %vm1171, %v1570, 0
      %v1580 = vsel %vm1172, %v1571, 0
      %v1581 = vsel %vm1173, %v1572, 0
      %v1582 = vsel %vm1174, %v1573, 0
      %v1583 = vsel %vm1175, %v1574, 0
      %v1584 = vsel %vm1176, %v1575, 0
      %v1585 = vsel %vm1177, %v1576, 0
      %v1586 = vsel %vm1178, %v1577, 0
      %v1587 = vsel %vm1179, %v1578, 0
      %v1589 = vshrl.u32 %v1579, 16
      %v1591 = vrot.slane %v1589, 7
      %v1593 = vshrl.u32 %v1580, 16
      %v1595 = vrot.slane %v1593, 7
      %v1596 = vshll.u32 %v1580, 16
      %v1598 = vor.u32 %v1595, %v1596
      %v1599 = vsel %vm1189, %v1591, %v1598
      %v1601 = vshrl.u32 %v1581, 16
      %v1603 = vrot.slane %v1601, 7
      %v1604 = vshll.u32 %v1581, 16
      %v1606 = vor.u32 %v1603, %v1604
      %v1607 = vsel %vm1189, %v1595, %v1606
      %v1609 = vshrl.u32 %v1582, 16
      %v1611 = vrot.slane %v1609, 7
      %v1612 = vshll.u32 %v1582, 16
      %v1614 = vor.u32 %v1611, %v1612
      %v1615 = vsel %vm1189, %v1603, %v1614
      %v1617 = vshrl.u32 %v1583, 16
      %v1619 = vrot.slane %v1617, 7
      %v1620 = vshll.u32 %v1583, 16
      %v1622 = vor.u32 %v1619, %v1620
      %v1623 = vsel %vm1189, %v1611, %v1622
      %v1625 = vshrl.u32 %v1584, 16
      %v1627 = vrot.slane %v1625, 7
      %v1628 = vshll.u32 %v1584, 16
      %v1630 = vor.u32 %v1627, %v1628
      %v1631 = vsel %vm1189, %v1619, %v1630
      %v1633 = vshrl.u32 %v1585, 16
      %v1635 = vrot.slane %v1633, 7
      %v1636 = vshll.u32 %v1585, 16
      %v1638 = vor.u32 %v1635, %v1636
      %v1639 = vsel %vm1189, %v1627, %v1638
      %v1641 = vshrl.u32 %v1586, 16
      %v1643 = vrot.slane %v1641, 7
      %v1644 = vshll.u32 %v1586, 16
      %v1646 = vor.u32 %v1643, %v1644
      %v1647 = vsel %vm1189, %v1635, %v1646
      %v1649 = vshrl.u32 %v1587, 16
      %v1651 = vrot.slane %v1649, 7
      %v1652 = vshll.u32 %v1587, 16
      %v1654 = vor.u32 %v1651, %v1652
      %v1655 = vsel %vm1189, %v1643, %v1654
      %1656 = vrot.lane.b32.xlu0 %v1599, 12
      %v1657 = vpop.permute.xlu0 %1656
      %1658 = vrot.lane.b32.xlu0 %v1607, 12
      %v1659 = vpop.permute.xlu0 %1658
      %1660 = vrot.lane.b32.xlu0 %v1615, 12
      %v1661 = vpop.permute.xlu0 %1660
      %1662 = vrot.lane.b32.xlu0 %v1623, 12
      %v1663 = vpop.permute.xlu0 %1662
      %1664 = vrot.lane.b32.xlu0 %v1631, 12
      %v1665 = vpop.permute.xlu0 %1664
      %1666 = vrot.lane.b32.xlu0 %v1639, 12
      %v1667 = vpop.permute.xlu0 %1666
      %1668 = vrot.lane.b32.xlu0 %v1647, 12
      %v1669 = vpop.permute.xlu0 %1668
      %1670 = vrot.lane.b32.xlu0 %v1655, 12
      %v1671 = vpop.permute.xlu0 %1670
      %vm1680 = vcmask 130144
      %1681 = vst.msk [vmem:[#allocation3] sm:$0xff] %vm1680, %v1657
      %1682 = vst.msk [vmem:[#allocation3 + $0x8] sm:$0xff] %vm1680, %v1659
      %1683 = vst.msk [vmem:[#allocation3 + $0x10] sm:$0xff] %vm1680, %v1661
      %1684 = vst.msk [vmem:[#allocation3 + $0x18] sm:$0xff] %vm1680, %v1663
      %1685 = vst.msk [vmem:[#allocation3 + $0x20] sm:$0xff] %vm1680, %v1665
      %1686 = vst.msk [vmem:[#allocation3 + $0x28] sm:$0xff] %vm1680, %v1667
      %1687 = vst.msk [vmem:[#allocation3 + $0x30] sm:$0xff] %vm1680, %v1669
      %1688 = vst.msk [vmem:[#allocation3 + $0x38] sm:$0xff] %vm1680, %v1671
      %v1689 = vld [vmem:[#allocation2 + $0x10] sm:$0xff]
      %v1690 = vld [vmem:[#allocation2 + $0x18] sm:$0xff]
      %v1691 = vld [vmem:[#allocation2 + $0x20] sm:$0xff]
      %v1692 = vld [vmem:[#allocation2 + $0x28] sm:$0xff]
      %v1693 = vld [vmem:[#allocation2 + $0x30] sm:$0xff]
      %v1694 = vld [vmem:[#allocation2 + $0x38] sm:$0xff]
      %v1695 = vld [vmem:[#allocation2 + $0x40] sm:$0xff]
      %v1696 = vld [vmem:[#allocation2 + $0x48] sm:$0xff]
      %1705 = vrot.lane.b32.xlu0 %v1689, 16
      %v1706 = vpop.permute.xlu0 %1705
      %1707 = vrot.lane.b32.xlu0 %v1690, 16
      %v1708 = vpop.permute.xlu0 %1707
      %1709 = vrot.lane.b32.xlu0 %v1691, 16
      %v1710 = vpop.permute.xlu0 %1709
      %1711 = vrot.lane.b32.xlu0 %v1692, 16
      %v1712 = vpop.permute.xlu0 %1711
      %1713 = vrot.lane.b32.xlu0 %v1693, 16
      %v1714 = vpop.permute.xlu0 %1713
      %1715 = vrot.lane.b32.xlu0 %v1694, 16
      %v1716 = vpop.permute.xlu0 %1715
      %1717 = vrot.lane.b32.xlu0 %v1695, 16
      %v1718 = vpop.permute.xlu0 %1717
      %1719 = vrot.lane.b32.xlu0 %v1696, 16
      %v1720 = vpop.permute.xlu0 %1719
      %vm1729 = vcmask 162944
      %1730 = vst.msk [vmem:[#allocation3] sm:$0xff] %vm1729, %v1706
      %1731 = vst.msk [vmem:[#allocation3 + $0x8] sm:$0xff] %vm1729, %v1708
      %1732 = vst.msk [vmem:[#allocation3 + $0x10] sm:$0xff] %vm1729, %v1710
      %1733 = vst.msk [vmem:[#allocation3 + $0x18] sm:$0xff] %vm1729, %v1712
      %1734 = vst.msk [vmem:[#allocation3 + $0x20] sm:$0xff] %vm1729, %v1714
      %1735 = vst.msk [vmem:[#allocation3 + $0x28] sm:$0xff] %vm1729, %v1716
      %1736 = vst.msk [vmem:[#allocation3 + $0x30] sm:$0xff] %vm1729, %v1718
      %1737 = vst.msk [vmem:[#allocation3 + $0x38] sm:$0xff] %vm1729, %v1720
      %v1738 = vld [vmem:[#allocation2 + $0x10] sm:$0xff]
      %v1739 = vld [vmem:[#allocation2 + $0x18] sm:$0xff]
      %v1740 = vld [vmem:[#allocation2 + $0x20] sm:$0xff]
      %v1741 = vld [vmem:[#allocation2 + $0x28] sm:$0xff]
      %v1742 = vld [vmem:[#allocation2 + $0x30] sm:$0xff]
      %v1743 = vld [vmem:[#allocation2 + $0x38] sm:$0xff]
      %v1744 = vld [vmem:[#allocation2 + $0x40] sm:$0xff]
      %v1745 = vld [vmem:[#allocation2 + $0x48] sm:$0xff]
      %v1746 = vld [vmem:[#allocation2 + $0x50] sm:$0x1]
      %v1747 = vsel %vm1451, %v1738, 0
      %v1748 = vsel %vm1452, %v1739, 0
      %v1749 = vsel %vm1453, %v1740, 0
      %v1750 = vsel %vm1454, %v1741, 0
      %v1751 = vsel %vm1455, %v1742, 0
      %v1752 = vsel %vm1456, %v1743, 0
      %v1753 = vsel %vm1457, %v1744, 0
      %v1754 = vsel %vm1458, %v1745, 0
      %v1755 = vsel %vm1459, %v1746, 0
      %v1757 = vshrl.u32 %v1747, 16
      %v1759 = vshll.u32 %v1747, 16
      %v1761 = vrot.slane %v1759, 1
      %v1762 = vor.u32 %v1757, %v1761
      %v1764 = vshll.u32 %v1748, 16
      %v1766 = vrot.slane %v1764, 1
      %v1767 = vsel %vm1107, %v1762, %v1766
      %v1768 = vshrl.u32 %v1748, 16
      %v1770 = vor.u32 %v1768, %v1766
      %v1772 = vshll.u32 %v1749, 16
      %v1774 = vrot.slane %v1772, 1
      %v1775 = vsel %vm1107, %v1770, %v1774
      %v1776 = vshrl.u32 %v1749, 16
      %v1778 = vor.u32 %v1776, %v1774
      %v1780 = vshll.u32 %v1750, 16
      %v1782 = vrot.slane %v1780, 1
      %v1783 = vsel %vm1107, %v1778, %v1782
      %v1784 = vshrl.u32 %v1750, 16
      %v1786 = vor.u32 %v1784, %v1782
      %v1788 = vshll.u32 %v1751, 16
      %v1790 = vrot.slane %v1788, 1
      %v1791 = vsel %vm1107, %v1786, %v1790
      %v1792 = vshrl.u32 %v1751, 16
      %v1794 = vor.u32 %v1792, %v1790
      %v1796 = vshll.u32 %v1752, 16
      %v1798 = vrot.slane %v1796, 1
      %v1799 = vsel %vm1107, %v1794, %v1798
      %v1800 = vshrl.u32 %v1752, 16
      %v1802 = vor.u32 %v1800, %v1798
      %v1804 = vshll.u32 %v1753, 16
      %v1806 = vrot.slane %v1804, 1
      %v1807 = vsel %vm1107, %v1802, %v1806
      %v1808 = vshrl.u32 %v1753, 16
      %v1810 = vor.u32 %v1808, %v1806
      %v1812 = vshll.u32 %v1754, 16
      %v1814 = vrot.slane %v1812, 1
      %v1815 = vsel %vm1107, %v1810, %v1814
      %v1816 = vshrl.u32 %v1754, 16
      %v1818 = vor.u32 %v1816, %v1814
      %v1820 = vshll.u32 %v1755, 16
      %v1822 = vrot.slane %v1820, 1
      %v1823 = vsel %vm1107, %v1818, %v1822
      %1824 = vrot.lane.b32.xlu0 %v1767, 20
      %v1825 = vpop.permute.xlu0 %1824
      %1826 = vrot.lane.b32.xlu0 %v1775, 20
      %v1827 = vpop.permute.xlu0 %1826
      %1828 = vrot.lane.b32.xlu0 %v1783, 20
      %v1829 = vpop.permute.xlu0 %1828
      %1830 = vrot.lane.b32.xlu0 %v1791, 20
      %v1831 = vpop.permute.xlu0 %1830
      %1832 = vrot.lane.b32.xlu0 %v1799, 20
      %v1833 = vpop.permute.xlu0 %1832
      %1834 = vrot.lane.b32.xlu0 %v1807, 20
      %v1835 = vpop.permute.xlu0 %1834
      %1836 = vrot.lane.b32.xlu0 %v1815, 20
      %v1837 = vpop.permute.xlu0 %1836
      %1838 = vrot.lane.b32.xlu0 %v1823, 20
      %v1839 = vpop.permute.xlu0 %1838
      %vm1848 = vcmask 195744
      %1849 = vst.msk [vmem:[#allocation3] sm:$0xff] %vm1848, %v1825
      %1850 = vst.msk [vmem:[#allocation3 + $0x8] sm:$0xff] %vm1848, %v1827
      %1851 = vst.msk [vmem:[#allocation3 + $0x10] sm:$0xff] %vm1848, %v1829
      %1852 = vst.msk [vmem:[#allocation3 + $0x18] sm:$0xff] %vm1848, %v1831
      %1853 = vst.msk [vmem:[#allocation3 + $0x20] sm:$0xff] %vm1848, %v1833
      %1854 = vst.msk [vmem:[#allocation3 + $0x28] sm:$0xff] %vm1848, %v1835
      %1855 = vst.msk [vmem:[#allocation3 + $0x30] sm:$0xff] %vm1848, %v1837
      %1856 = vst.msk [vmem:[#allocation3 + $0x38] sm:$0xff] %vm1848, %v1839
      %v1857 = vld [vmem:[#allocation2 + $0x10] sm:$0x80]
      %v1858 = vld [vmem:[#allocation2 + $0x18] sm:$0xff]
      %v1859 = vld [vmem:[#allocation2 + $0x20] sm:$0xff]
      %v1860 = vld [vmem:[#allocation2 + $0x28] sm:$0xff]
      %v1861 = vld [vmem:[#allocation2 + $0x30] sm:$0xff]
      %v1862 = vld [vmem:[#allocation2 + $0x38] sm:$0xff]
      %v1863 = vld [vmem:[#allocation2 + $0x40] sm:$0xff]
      %v1864 = vld [vmem:[#allocation2 + $0x48] sm:$0xff]
      %v1865 = vld [vmem:[#allocation2 + $0x50] sm:$0xff]
      %v1866 = vsel %vm1171, %v1857, 0
      %v1867 = vsel %vm1172, %v1858, 0
      %v1868 = vsel %vm1173, %v1859, 0
      %v1869 = vsel %vm1174, %v1860, 0
      %v1870 = vsel %vm1175, %v1861, 0
      %v1871 = vsel %vm1176, %v1862, 0
      %v1872 = vsel %vm1177, %v1863, 0
      %v1873 = vsel %vm1178, %v1864, 0
      %v1874 = vsel %vm1179, %v1865, 0
      %v1876 = vshrl.u32 %v1866, 16
      %v1878 = vrot.slane %v1876, 7
      %v1880 = vshrl.u32 %v1867, 16
      %v1882 = vrot.slane %v1880, 7
      %v1883 = vshll.u32 %v1867, 16
      %v1885 = vor.u32 %v1882, %v1883
      %v1886 = vsel %vm1189, %v1878, %v1885
      %v1888 = vshrl.u32 %v1868, 16
      %v1890 = vrot.slane %v1888, 7
      %v1891 = vshll.u32 %v1868, 16
      %v1893 = vor.u32 %v1890, %v1891
      %v1894 = vsel %vm1189, %v1882, %v1893
      %v1896 = vshrl.u32 %v1869, 16
      %v1898 = vrot.slane %v1896, 7
      %v1899 = vshll.u32 %v1869, 16
      %v1901 = vor.u32 %v1898, %v1899
      %v1902 = vsel %vm1189, %v1890, %v1901
      %v1904 = vshrl.u32 %v1870, 16
      %v1906 = vrot.slane %v1904, 7
      %v1907 = vshll.u32 %v1870, 16
      %v1909 = vor.u32 %v1906, %v1907
      %v1910 = vsel %vm1189, %v1898, %v1909
      %v1912 = vshrl.u32 %v1871, 16
      %v1914 = vrot.slane %v1912, 7
      %v1915 = vshll.u32 %v1871, 16
      %v1917 = vor.u32 %v1914, %v1915
      %v1918 = vsel %vm1189, %v1906, %v1917
      %v1920 = vshrl.u32 %v1872, 16
      %v1922 = vrot.slane %v1920, 7
      %v1923 = vshll.u32 %v1872, 16
      %v1925 = vor.u32 %v1922, %v1923
      %v1926 = vsel %vm1189, %v1914, %v1925
      %v1928 = vshrl.u32 %v1873, 16
      %v1930 = vrot.slane %v1928, 7
      %v1931 = vshll.u32 %v1873, 16
      %v1933 = vor.u32 %v1930, %v1931
      %v1934 = vsel %vm1189, %v1922, %v1933
      %v1936 = vshrl.u32 %v1874, 16
      %v1938 = vrot.slane %v1936, 7
      %v1939 = vshll.u32 %v1874, 16
      %v1941 = vor.u32 %v1938, %v1939
      %v1942 = vsel %vm1189, %v1930, %v1941
      %1943 = vrot.lane.b32.xlu0 %v1886, 24
      %v1944 = vpop.permute.xlu0 %1943
      %1945 = vrot.lane.b32.xlu0 %v1894, 24
      %v1946 = vpop.permute.xlu0 %1945
      %1947 = vrot.lane.b32.xlu0 %v1902, 24
      %v1948 = vpop.permute.xlu0 %1947
      %1949 = vrot.lane.b32.xlu0 %v1910, 24
      %v1950 = vpop.permute.xlu0 %1949
      %1951 = vrot.lane.b32.xlu0 %v1918, 24
      %v1952 = vpop.permute.xlu0 %1951
      %1953 = vrot.lane.b32.xlu0 %v1926, 24
      %v1954 = vpop.permute.xlu0 %1953
      %1955 = vrot.lane.b32.xlu0 %v1934, 24
      %v1956 = vpop.permute.xlu0 %1955
      %1957 = vrot.lane.b32.xlu0 %v1942, 24
      %v1958 = vpop.permute.xlu0 %1957
      %vm1967 = vcmask 228544
      %1968 = vst.msk [vmem:[#allocation3] sm:$0xff] %vm1967, %v1944
      %1969 = vst.msk [vmem:[#allocation3 + $0x8] sm:$0xff] %vm1967, %v1946
      %1970 = vst.msk [vmem:[#allocation3 + $0x10] sm:$0xff] %vm1967, %v1948
      %1971 = vst.msk [vmem:[#allocation3 + $0x18] sm:$0xff] %vm1967, %v1950
      %1972 = vst.msk [vmem:[#allocation3 + $0x20] sm:$0xff] %vm1967, %v1952
      %1973 = vst.msk [vmem:[#allocation3 + $0x28] sm:$0xff] %vm1967, %v1954
      %1974 = vst.msk [vmem:[#allocation3 + $0x30] sm:$0xff] %vm1967, %v1956
      %1975 = vst.msk [vmem:[#allocation3 + $0x38] sm:$0xff] %vm1967, %v1958
      %v1976 = vld [vmem:[#allocation2 + $0x18] sm:$0xff]
      %v1977 = vld [vmem:[#allocation2 + $0x20] sm:$0xff]
      %v1978 = vld [vmem:[#allocation2 + $0x28] sm:$0xff]
      %v1979 = vld [vmem:[#allocation2 + $0x30] sm:$0xff]
      %v1980 = vld [vmem:[#allocation2 + $0x38] sm:$0xff]
      %v1981 = vld [vmem:[#allocation2 + $0x40] sm:$0xff]
      %v1982 = vld [vmem:[#allocation2 + $0x48] sm:$0xff]
      %v1983 = vld [vmem:[#allocation2 + $0x50] sm:$0xff]
      %1992 = vrot.lane.b32.xlu0 %v1976, 28
      %v1993 = vpop.permute.xlu0 %1992
      %1994 = vrot.lane.b32.xlu0 %v1977, 28
      %v1995 = vpop.permute.xlu0 %1994
      %1996 = vrot.lane.b32.xlu0 %v1978, 28
      %v1997 = vpop.permute.xlu0 %1996
      %1998 = vrot.lane.b32.xlu0 %v1979, 28
      %v1999 = vpop.permute.xlu0 %1998
      %2000 = vrot.lane.b32.xlu0 %v1980, 28
      %v2001 = vpop.permute.xlu0 %2000
      %2002 = vrot.lane.b32.xlu0 %v1981, 28
      %v2003 = vpop.permute.xlu0 %2002
      %2004 = vrot.lane.b32.xlu0 %v1982, 28
      %v2005 = vpop.permute.xlu0 %2004
      %2006 = vrot.lane.b32.xlu0 %v1983, 28
      %v2007 = vpop.permute.xlu0 %2006
      %vm2016 = vcmask 261344
      %2017 = vst.msk [vmem:[#allocation3] sm:$0xff] %vm2016, %v1993
      %2018 = vst.msk [vmem:[#allocation3 + $0x8] sm:$0xff] %vm2016, %v1995
      %2019 = vst.msk [vmem:[#allocation3 + $0x10] sm:$0xff] %vm2016, %v1997
      %2020 = vst.msk [vmem:[#allocation3 + $0x18] sm:$0xff] %vm2016, %v1999
      %2021 = vst.msk [vmem:[#allocation3 + $0x20] sm:$0xff] %vm2016, %v2001
      %2022 = vst.msk [vmem:[#allocation3 + $0x28] sm:$0xff] %vm2016, %v2003
      %2023 = vst.msk [vmem:[#allocation3 + $0x30] sm:$0xff] %vm2016, %v2005
      %2024 = vst.msk [vmem:[#allocation3 + $0x38] sm:$0xff] %vm2016, %v2007
      %v2025 = vld [vmem:[#allocation2 + $0x18] sm:$0xff]
      %v2026 = vld [vmem:[#allocation2 + $0x20] sm:$0xff]
      %v2027 = vld [vmem:[#allocation2 + $0x28] sm:$0xff]
      %v2028 = vld [vmem:[#allocation2 + $0x30] sm:$0xff]
      %v2029 = vld [vmem:[#allocation2 + $0x38] sm:$0xff]
      %v2030 = vld [vmem:[#allocation2 + $0x40] sm:$0xff]
      %v2031 = vld [vmem:[#allocation2 + $0x48] sm:$0xff]
      %v2032 = vld [vmem:[#allocation2 + $0x50] sm:$0xff]
      %v2033 = vld [vmem:[#allocation2 + $0x58] sm:$0x1]
      %v2034 = vsel %vm1451, %v2025, 0
      %v2035 = vsel %vm1452, %v2026, 0
      %v2036 = vsel %vm1453, %v2027, 0
      %v2037 = vsel %vm1454, %v2028, 0
      %v2038 = vsel %vm1455, %v2029, 0
      %v2039 = vsel %vm1456, %v2030, 0
      %v2040 = vsel %vm1457, %v2031, 0
      %v2041 = vsel %vm1458, %v2032, 0
      %v2042 = vsel %vm1459, %v2033, 0
      %v2044 = vshrl.u32 %v2034, 16
      %v2046 = vshll.u32 %v2034, 16
      %v2048 = vrot.slane %v2046, 1
      %v2049 = vor.u32 %v2044, %v2048
      %v2051 = vshll.u32 %v2035, 16
      %v2053 = vrot.slane %v2051, 1
      %v2054 = vsel %vm1107, %v2049, %v2053
      %v2055 = vshrl.u32 %v2035, 16
      %v2057 = vor.u32 %v2055, %v2053
      %v2059 = vshll.u32 %v2036, 16
      %v2061 = vrot.slane %v2059, 1
      %v2062 = vsel %vm1107, %v2057, %v2061
      %v2063 = vshrl.u32 %v2036, 16
      %v2065 = vor.u32 %v2063, %v2061
      %v2067 = vshll.u32 %v2037, 16
      %v2069 = vrot.slane %v2067, 1
      %v2070 = vsel %vm1107, %v2065, %v2069
      %v2071 = vshrl.u32 %v2037, 16
      %v2073 = vor.u32 %v2071, %v2069
      %v2075 = vshll.u32 %v2038, 16
      %v2077 = vrot.slane %v2075, 1
      %v2078 = vsel %vm1107, %v2073, %v2077
      %v2079 = vshrl.u32 %v2038, 16
      %v2081 = vor.u32 %v2079, %v2077
      %v2083 = vshll.u32 %v2039, 16
      %v2085 = vrot.slane %v2083, 1
      %v2086 = vsel %vm1107, %v2081, %v2085
      %v2087 = vshrl.u32 %v2039, 16
      %v2089 = vor.u32 %v2087, %v2085
      %v2091 = vshll.u32 %v2040, 16
      %v2093 = vrot.slane %v2091, 1
      %v2094 = vsel %vm1107, %v2089, %v2093
      %v2095 = vshrl.u32 %v2040, 16
      %v2097 = vor.u32 %v2095, %v2093
      %v2099 = vshll.u32 %v2041, 16
      %v2101 = vrot.slane %v2099, 1
      %v2102 = vsel %vm1107, %v2097, %v2101
      %v2103 = vshrl.u32 %v2041, 16
      %v2105 = vor.u32 %v2103, %v2101
      %v2107 = vshll.u32 %v2042, 16
      %v2109 = vrot.slane %v2107, 1
      %v2110 = vsel %vm1107, %v2105, %v2109
      %2111 = vrot.lane.b32.xlu0 %v2054, 32
      %v2112 = vpop.permute.xlu0 %2111
      %2113 = vrot.lane.b32.xlu0 %v2062, 32
      %v2114 = vpop.permute.xlu0 %2113
      %2115 = vrot.lane.b32.xlu0 %v2070, 32
      %v2116 = vpop.permute.xlu0 %2115
      %2117 = vrot.lane.b32.xlu0 %v2078, 32
      %v2118 = vpop.permute.xlu0 %2117
      %2119 = vrot.lane.b32.xlu0 %v2086, 32
      %v2120 = vpop.permute.xlu0 %2119
      %2121 = vrot.lane.b32.xlu0 %v2094, 32
      %v2122 = vpop.permute.xlu0 %2121
      %2123 = vrot.lane.b32.xlu0 %v2102, 32
      %v2124 = vpop.permute.xlu0 %2123
      %2125 = vrot.lane.b32.xlu0 %v2110, 32
      %v2126 = vpop.permute.xlu0 %2125
      %vm2135 = vcmask 294144
      %2136 = vst.msk [vmem:[#allocation3] sm:$0xff] %vm2135, %v2112
      %2137 = vst.msk [vmem:[#allocation3 + $0x8] sm:$0xff] %vm2135, %v2114
      %2138 = vst.msk [vmem:[#allocation3 + $0x10] sm:$0xff] %vm2135, %v2116
      %2139 = vst.msk [vmem:[#allocation3 + $0x18] sm:$0xff] %vm2135, %v2118
      %2140 = vst.msk [vmem:[#allocation3 + $0x20] sm:$0xff] %vm2135, %v2120
      %2141 = vst.msk [vmem:[#allocation3 + $0x28] sm:$0xff] %vm2135, %v2122
      %2142 = vst.msk [vmem:[#allocation3 + $0x30] sm:$0xff] %vm2135, %v2124
      %2143 = vst.msk [vmem:[#allocation3 + $0x38] sm:$0xff] %vm2135, %v2126
      %v2144 = vld [vmem:[#allocation3] sm:$0xff]
      %v2145 = vld [vmem:[#allocation3 + $0x8] sm:$0xff]
      %v2146 = vld [vmem:[#allocation3 + $0x10] sm:$0xff]
      %v2147 = vld [vmem:[#allocation3 + $0x18] sm:$0xff]
      %v2148 = vld [vmem:[#allocation3 + $0x20] sm:$0xff]
      %v2149 = vld [vmem:[#allocation3 + $0x28] sm:$0xff]
      %v2150 = vld [vmem:[#allocation3 + $0x30] sm:$0xff]
      %v2151 = vld [vmem:[#allocation3 + $0x38] sm:$0xff]
      %v2152 = vld [vmem:[%s6] sm:$0xf]
      %v2153 = vld [vmem:[%s6 + $0x4] sm:$0xf]
      %v2154 = vld [vmem:[%s6 + $0x8] sm:$0xf]
      %v2155 = vld [vmem:[%s6 + $0xc] sm:$0xf]
      %v2156 = vld [vmem:[%s6 + $0x10] sm:$0x3]
      %v2162 = vunpack.c.l.b16 %v2152
      %v2163 = vunpack.c.l.b16 %v2153
      %v2164 = vunpack.c.l.b16 %v2154
      %v2165 = vunpack.c.l.b16 %v2155
      %v2166 = vunpack.c.l.b16 %v2156
      %v2167 = vpack.c.b16 %v2163, %v2162
      %v2168 = vpack.c.b16 %v2165, %v2164
      %v2169 = vpack.c.b16 %v2166, %v2166
      %vm2172 = vcmask 293888
      %v2174 = vsel %vm2172, %v2144, 0
      %v2177 = vsel %vm2172, %v2145, 0
      %v2180 = vsel %vm2172, %v2146, 0
      %v2183 = vsel %vm2172, %v2147, 0
      %v2186 = vsel %vm2172, %v2148, 0
      %v2189 = vsel %vm2172, %v2149, 0
      %v2192 = vsel %vm2172, %v2150, 0
      %v2195 = vsel %vm2172, %v2151, 0
      %vm2197 = vcmask 1041408
      %v2199 = vsel %vm2197, %v2169, 0
      %2201 = vmatprep.subr.bf16.mxu0 0
      %2202 = vmatpush1.bf16.msra.mxu0 %v2167
      %2203 = vmatprep.subr.bf16.mxu0 0
      %2204 = vmatpush1.bf16.msra.mxu0 %v2168
      %2205 = vmatprep.subr.bf16.mxu0 0
      %2206 = vmatpush1.bf16.msra.mxu0 %v2199
      %2207 = vmatprep.subr.bf16.mxu0 0
      %2208 = vmatpush1.bf16.msra.mxu0 0
      %2209 = vmatprep.subr.bf16.mxu0 0
      %2210 = vmatpush1.bf16.msra.mxu0 0
      %2211 = vmatprep.subr.bf16.mxu0 0
      %2212 = vmatpush1.bf16.msra.mxu0 0
      %2213 = vmatprep.subr.bf16.mxu0 0
      %2214 = vmatpush1.bf16.msra.mxu0 0
      %2215 = vmatprep.subr.bf16.mxu0 0
      %2216 = vmatpush1.bf16.msra.mxu0 0
      %2217 = vmatprep.subr.bf16.mxu0 0
      %2218 = vmatpush1.bf16.msra.mxu0 0
      %2219 = vmatprep.subr.bf16.mxu0 0
      %2220 = vmatpush1.bf16.msra.mxu0 0
      %2221 = vmatprep.subr.bf16.mxu0 0
      %2222 = vmatpush1.bf16.msra.mxu0 0
      %2223 = vmatprep.subr.bf16.mxu0 0
      %2224 = vmatpush1.bf16.msra.mxu0 0
      %2225 = vmatprep.subr.bf16.mxu0 0
      %2226 = vmatpush1.bf16.msra.mxu0 0
      %2227 = vmatprep.subr.bf16.mxu0 0
      %2228 = vmatpush1.bf16.msra.mxu0 0
      %2229 = vmatprep.subr.bf16.mxu0 0
      %2230 = vmatpush1.bf16.msra.mxu0 0
      %2231 = vmatprep.subr.bf16.mxu0 0
      %2232 = vmatpush1.bf16.msra.mxu0 0
      %2233 = vmatprep.mubr.bf16.mxu0 0
      %2234 = vmatmul.mubr.bf16.gmra.mrb[0].mxu0 %v2174
      %v2235 = vpop.f32.mrb[0].mxu0
      %v2236 = vadd.f32 0.0, %v2235
      %v2237 = vpop.f32.mrb[0].mxu0
      %v2238 = vpop.f32.mrb[0].mxu0
      %v2239 = vadd.f32 0.0, %v2238
      %v2240 = vpop.f32.mrb[0].mxu0
      %2241 = vmatprep.mubr.bf16.mxu0 0
      %2242 = vmatmul.mubr.bf16.gmra.mrb[0].mxu0 %v2177
      %v2243 = vpop.f32.mrb[0].mxu0
      %v2244 = vadd.f32 0.0, %v2243
      %v2245 = vpop.f32.mrb[0].mxu0
      %v2246 = vpop.f32.mrb[0].mxu0
      %v2247 = vadd.f32 0.0, %v2246
      %v2248 = vpop.f32.mrb[0].mxu0
      %2249 = vmatprep.mubr.bf16.mxu0 0
      %2250 = vmatmul.mubr.bf16.gmra.mrb[0].mxu0 %v2180
      %v2251 = vpop.f32.mrb[0].mxu0
      %v2252 = vadd.f32 0.0, %v2251
      %v2253 = vpop.f32.mrb[0].mxu0
      %v2254 = vpop.f32.mrb[0].mxu0
      %v2255 = vadd.f32 0.0, %v2254
      %v2256 = vpop.f32.mrb[0].mxu0
      %2257 = vmatprep.mubr.bf16.mxu0 0
      %2258 = vmatmul.mubr.bf16.gmra.mrb[0].mxu0 %v2183
      %v2259 = vpop.f32.mrb[0].mxu0
      %v2260 = vadd.f32 0.0, %v2259
      %v2261 = vpop.f32.mrb[0].mxu0
      %v2262 = vpop.f32.mrb[0].mxu0
      %v2263 = vadd.f32 0.0, %v2262
      %v2264 = vpop.f32.mrb[0].mxu0
      %2265 = vmatprep.mubr.bf16.mxu0 0
      %2266 = vmatmul.mubr.bf16.gmra.mrb[0].mxu0 %v2186
      %v2267 = vpop.f32.mrb[0].mxu0
      %v2268 = vadd.f32 0.0, %v2267
      %v2269 = vpop.f32.mrb[0].mxu0
      %v2270 = vpop.f32.mrb[0].mxu0
      %v2271 = vadd.f32 0.0, %v2270
      %v2272 = vpop.f32.mrb[0].mxu0
      %2273 = vmatprep.mubr.bf16.mxu0 0
      %2274 = vmatmul.mubr.bf16.gmra.mrb[0].mxu0 %v2189
      %v2275 = vpop.f32.mrb[0].mxu0
      %v2276 = vadd.f32 0.0, %v2275
      %v2277 = vpop.f32.mrb[0].mxu0
      %v2278 = vpop.f32.mrb[0].mxu0
      %v2279 = vadd.f32 0.0, %v2278
      %v2280 = vpop.f32.mrb[0].mxu0
      %2281 = vmatprep.mubr.bf16.mxu0 0
      %2282 = vmatmul.mubr.bf16.gmra.mrb[0].mxu0 %v2192
      %v2283 = vpop.f32.mrb[0].mxu0
      %v2284 = vadd.f32 0.0, %v2283
      %v2285 = vpop.f32.mrb[0].mxu0
      %v2286 = vpop.f32.mrb[0].mxu0
      %v2287 = vadd.f32 0.0, %v2286
      %v2288 = vpop.f32.mrb[0].mxu0
      %2289 = vmatprep.mubr.bf16.mxu0 0
      %2290 = vmatmul.mubr.bf16.gmra.mrb[0].mxu0 %v2195
      %v2291 = vpop.f32.mrb[0].mxu0
      %v2292 = vadd.f32 0.0, %v2291
      %v2293 = vpop.f32.mrb[0].mxu0
      %v2294 = vpop.f32.mrb[0].mxu0
      %v2295 = vadd.f32 0.0, %v2294
      %v2296 = vpop.f32.mrb[0].mxu0
      %2297 = vdwg.mxu0
      %v2298 = vld [vmem:[%s7] sm:$0x1]
      %v2300 = vlaneseq
      %v2301 = vshrl.u32 %v2300, 7
      %v2302 = vsub.s32 0, %v2301
      %v2303 = vrot.slane %v2298, %v2302
      %v2305 = vmul.f32 %v2236, %v2303
      %v2306 = vmul.f32 %v2239, %v2303
      %v2307 = vmul.f32 %v2244, %v2303
      %v2308 = vmul.f32 %v2247, %v2303
      %v2309 = vmul.f32 %v2252, %v2303
      %v2310 = vmul.f32 %v2255, %v2303
      %v2311 = vmul.f32 %v2260, %v2303
      %v2312 = vmul.f32 %v2263, %v2303
      %v2313 = vmul.f32 %v2268, %v2303
      %v2314 = vmul.f32 %v2271, %v2303
      %v2315 = vmul.f32 %v2276, %v2303
      %v2316 = vmul.f32 %v2279, %v2303
      %v2317 = vmul.f32 %v2284, %v2303
      %v2318 = vmul.f32 %v2287, %v2303
      %v2319 = vmul.f32 %v2292, %v2303
      %v2320 = vmul.f32 %v2295, %v2303
      %v2321 = vld [vmem:[%s8] sm:$0x1]
      %v2323 = vlaneseq
      %v2324 = vshrl.u32 %v2323, 7
      %v2325 = vsub.s32 0, %v2324
      %v2326 = vrot.slane %v2321, %v2325
      %v2328 = vadd.f32 %v2305, %v2326
      %v2329 = vadd.f32 %v2306, %v2326
      %v2330 = vadd.f32 %v2307, %v2326
      %v2331 = vadd.f32 %v2308, %v2326
      %v2332 = vadd.f32 %v2309, %v2326
      %v2333 = vadd.f32 %v2310, %v2326
      %v2334 = vadd.f32 %v2311, %v2326
      %v2335 = vadd.f32 %v2312, %v2326
      %v2336 = vadd.f32 %v2313, %v2326
      %v2337 = vadd.f32 %v2314, %v2326
      %v2338 = vadd.f32 %v2315, %v2326
      %v2339 = vadd.f32 %v2316, %v2326
      %v2340 = vadd.f32 %v2317, %v2326
      %v2341 = vadd.f32 %v2318, %v2326
      %v2342 = vadd.f32 %v2319, %v2326
      %v2343 = vadd.f32 %v2320, %v2326
      %v2344 = vmax.f32 %v2328, 0.0
      %v2345 = vmax.f32 %v2329, 0.0
      %v2346 = vmax.f32 %v2330, 0.0
      %v2347 = vmax.f32 %v2331, 0.0
      %v2348 = vmax.f32 %v2332, 0.0
      %v2349 = vmax.f32 %v2333, 0.0
      %v2350 = vmax.f32 %v2334, 0.0
      %v2351 = vmax.f32 %v2335, 0.0
      %v2352 = vmax.f32 %v2336, 0.0
      %v2353 = vmax.f32 %v2337, 0.0
      %v2354 = vmax.f32 %v2338, 0.0
      %v2355 = vmax.f32 %v2339, 0.0
      %v2356 = vmax.f32 %v2340, 0.0
      %v2357 = vmax.f32 %v2341, 0.0
      %v2358 = vmax.f32 %v2342, 0.0
      %v2359 = vmax.f32 %v2343, 0.0
      %v2360 = vpack.c.bf16 %v2345, %v2344
      %v2361 = vpack.c.bf16 %v2347, %v2346
      %v2362 = vpack.c.bf16 %v2349, %v2348
      %v2363 = vpack.c.bf16 %v2351, %v2350
      %v2364 = vpack.c.bf16 %v2353, %v2352
      %v2365 = vpack.c.bf16 %v2355, %v2354
      %v2366 = vpack.c.bf16 %v2357, %v2356
      %v2367 = vpack.c.bf16 %v2359, %v2358
      %v2368 = vld [vmem:[%s9] sm:$0x3]
      %v2370 = vsel %vm890, %v2360, 0
      %v2373 = vsel %vm890, %v2361, 0
      %v2376 = vsel %vm890, %v2362, 0
      %v2379 = vsel %vm890, %v2363, 0
      %v2382 = vsel %vm890, %v2364, 0
      %v2385 = vsel %vm890, %v2365, 0
      %v2388 = vsel %vm890, %v2366, 0
      %v2391 = vsel %vm890, %v2367, 0
      %v2394 = vsel %vm2197, %v2368, 0
      %2396 = vmatprep.subr.bf16.mxu0 0
      %2397 = vmatpush1.bf16.msra.mxu0 %v2394
      %2398 = vmatprep.subr.bf16.mxu0 0
      %2399 = vmatpush1.bf16.msra.mxu0 0
      %2400 = vmatprep.subr.bf16.mxu0 0
      %2401 = vmatpush1.bf16.msra.mxu0 0
      %2402 = vmatprep.subr.bf16.mxu0 0
      %2403 = vmatpush1.bf16.msra.mxu0 0
      %2404 = vmatprep.subr.bf16.mxu0 0
      %2405 = vmatpush1.bf16.msra.mxu0 0
      %2406 = vmatprep.subr.bf16.mxu0 0
      %2407 = vmatpush1.bf16.msra.mxu0 0
      %2408 = vmatprep.subr.bf16.mxu0 0
      %2409 = vmatpush1.bf16.msra.mxu0 0
      %2410 = vmatprep.subr.bf16.mxu0 0
      %2411 = vmatpush1.bf16.msra.mxu0 0
      %2412 = vmatprep.subr.bf16.mxu0 0
      %2413 = vmatpush1.bf16.msra.mxu0 0
      %2414 = vmatprep.subr.bf16.mxu0 0
      %2415 = vmatpush1.bf16.msra.mxu0 0
      %2416 = vmatprep.subr.bf16.mxu0 0
      %2417 = vmatpush1.bf16.msra.mxu0 0
      %2418 = vmatprep.subr.bf16.mxu0 0
      %2419 = vmatpush1.bf16.msra.mxu0 0
      %2420 = vmatprep.subr.bf16.mxu0 0
      %2421 = vmatpush1.bf16.msra.mxu0 0
      %2422 = vmatprep.subr.bf16.mxu0 0
      %2423 = vmatpush1.bf16.msra.mxu0 0
      %2424 = vmatprep.subr.bf16.mxu0 0
      %2425 = vmatpush1.bf16.msra.mxu0 0
      %2426 = vmatprep.subr.bf16.mxu0 0
      %2427 = vmatpush1.bf16.msra.mxu0 0
      %2428 = vmatprep.mubr.bf16.mxu0 0
      %2429 = vmatmul.mubr.bf16.gmra.mrb[0].mxu0 %v2370
      %v2430 = vpop.f32.mrb[0].mxu0
      %v2431 = vadd.f32 0.0, %v2430
      %v2432 = vpop.f32.mrb[0].mxu0
      %v2433 = vpop.f32.mrb[0].mxu0
      %v2434 = vadd.f32 0.0, %v2433
      %v2435 = vpop.f32.mrb[0].mxu0
      %2436 = vmatprep.mubr.bf16.mxu0 0
      %2437 = vmatmul.mubr.bf16.gmra.mrb[0].mxu0 %v2373
      %v2438 = vpop.f32.mrb[0].mxu0
      %v2439 = vadd.f32 0.0, %v2438
      %v2440 = vpop.f32.mrb[0].mxu0
      %v2441 = vpop.f32.mrb[0].mxu0
      %v2442 = vadd.f32 0.0, %v2441
      %v2443 = vpop.f32.mrb[0].mxu0
      %2444 = vmatprep.mubr.bf16.mxu0 0
      %2445 = vmatmul.mubr.bf16.gmra.mrb[0].mxu0 %v2376
      %v2446 = vpop.f32.mrb[0].mxu0
      %v2447 = vadd.f32 0.0, %v2446
      %v2448 = vpop.f32.mrb[0].mxu0
      %v2449 = vpop.f32.mrb[0].mxu0
      %v2450 = vadd.f32 0.0, %v2449
      %v2451 = vpop.f32.mrb[0].mxu0
      %2452 = vmatprep.mubr.bf16.mxu0 0
      %2453 = vmatmul.mubr.bf16.gmra.mrb[0].mxu0 %v2379
      %v2454 = vpop.f32.mrb[0].mxu0
      %v2455 = vadd.f32 0.0, %v2454
      %v2456 = vpop.f32.mrb[0].mxu0
      %v2457 = vpop.f32.mrb[0].mxu0
      %v2458 = vadd.f32 0.0, %v2457
      %v2459 = vpop.f32.mrb[0].mxu0
      %2460 = vmatprep.mubr.bf16.mxu0 0
      %2461 = vmatmul.mubr.bf16.gmra.mrb[0].mxu0 %v2382
      %v2462 = vpop.f32.mrb[0].mxu0
      %v2463 = vadd.f32 0.0, %v2462
      %v2464 = vpop.f32.mrb[0].mxu0
      %v2465 = vpop.f32.mrb[0].mxu0
      %v2466 = vadd.f32 0.0, %v2465
      %v2467 = vpop.f32.mrb[0].mxu0
      %2468 = vmatprep.mubr.bf16.mxu0 0
      %2469 = vmatmul.mubr.bf16.gmra.mrb[0].mxu0 %v2385
      %v2470 = vpop.f32.mrb[0].mxu0
      %v2471 = vadd.f32 0.0, %v2470
      %v2472 = vpop.f32.mrb[0].mxu0
      %v2473 = vpop.f32.mrb[0].mxu0
      %v2474 = vadd.f32 0.0, %v2473
      %v2475 = vpop.f32.mrb[0].mxu0
      %2476 = vmatprep.mubr.bf16.mxu0 0
      %2477 = vmatmul.mubr.bf16.gmra.mrb[0].mxu0 %v2388
      %v2478 = vpop.f32.mrb[0].mxu0
      %v2479 = vadd.f32 0.0, %v2478
      %v2480 = vpop.f32.mrb[0].mxu0
      %v2481 = vpop.f32.mrb[0].mxu0
      %v2482 = vadd.f32 0.0, %v2481
      %v2483 = vpop.f32.mrb[0].mxu0
      %2484 = vmatprep.mubr.bf16.mxu0 0
      %2485 = vmatmul.mubr.bf16.gmra.mrb[0].mxu0 %v2391
      %v2486 = vpop.f32.mrb[0].mxu0
      %v2487 = vadd.f32 0.0, %v2486
      %v2488 = vpop.f32.mrb[0].mxu0
      %v2489 = vpop.f32.mrb[0].mxu0
      %v2490 = vadd.f32 0.0, %v2489
      %v2491 = vpop.f32.mrb[0].mxu0
      %2492 = vdwg.mxu0
      %v2493 = vld [vmem:[%s10] sm:$0x1]
      %v2495 = vlaneseq
      %v2496 = vshrl.u32 %v2495, 7
      %v2497 = vsub.s32 0, %v2496
      %v2498 = vrot.slane %v2493, %v2497
      %v2500 = vmul.f32 %v2431, %v2498
      %v2501 = vmul.f32 %v2434, %v2498
      %v2502 = vmul.f32 %v2439, %v2498
      %v2503 = vmul.f32 %v2442, %v2498
      %v2504 = vmul.f32 %v2447, %v2498
      %v2505 = vmul.f32 %v2450, %v2498
      %v2506 = vmul.f32 %v2455, %v2498
      %v2507 = vmul.f32 %v2458, %v2498
      %v2508 = vmul.f32 %v2463, %v2498
      %v2509 = vmul.f32 %v2466, %v2498
      %v2510 = vmul.f32 %v2471, %v2498
      %v2511 = vmul.f32 %v2474, %v2498
      %v2512 = vmul.f32 %v2479, %v2498
      %v2513 = vmul.f32 %v2482, %v2498
      %v2514 = vmul.f32 %v2487, %v2498
      %v2515 = vmul.f32 %v2490, %v2498
      %v2516 = vld [vmem:[%s11] sm:$0x1]
      %v2518 = vlaneseq
      %v2519 = vshrl.u32 %v2518, 7
      %v2520 = vsub.s32 0, %v2519
      %v2521 = vrot.slane %v2516, %v2520
      %v2523 = vadd.f32 %v2500, %v2521
      %v2524 = vadd.f32 %v2501, %v2521
      %v2525 = vadd.f32 %v2502, %v2521
      %v2526 = vadd.f32 %v2503, %v2521
      %v2527 = vadd.f32 %v2504, %v2521
      %v2528 = vadd.f32 %v2505, %v2521
      %v2529 = vadd.f32 %v2506, %v2521
      %v2530 = vadd.f32 %v2507, %v2521
      %v2531 = vadd.f32 %v2508, %v2521
      %v2532 = vadd.f32 %v2509, %v2521
      %v2533 = vadd.f32 %v2510, %v2521
      %v2534 = vadd.f32 %v2511, %v2521
      %v2535 = vadd.f32 %v2512, %v2521
      %v2536 = vadd.f32 %v2513, %v2521
      %v2537 = vadd.f32 %v2514, %v2521
      %v2538 = vadd.f32 %v2515, %v2521
      %v2539 = vunpack.c.l.bf16 %v586
      %v2540 = vunpack.c.l.bf16 %v587
      %v2541 = vunpack.c.l.bf16 %v588
      %v2542 = vunpack.c.l.bf16 %v589
      %v2543 = vunpack.c.l.bf16 %v590
      %v2544 = vunpack.c.l.bf16 %v591
      %v2545 = vunpack.c.l.bf16 %v592
      %v2546 = vunpack.c.l.bf16 %v593
      %v2547 = vunpack.c.l.bf16 %v594
      %v2548 = vunpack.c.l.bf16 %v595
      %v2549 = vunpack.c.l.bf16 %v596
      %v2550 = vunpack.c.l.bf16 %v597
      %v2551 = vunpack.c.l.bf16 %v598
      %v2552 = vunpack.c.l.bf16 %v599
      %v2553 = vunpack.c.l.bf16 %v600
      %v2554 = vunpack.c.l.bf16 %v601
      %v2555 = vadd.f32 %v2523, %v2539
      %v2556 = vadd.f32 %v2524, %v2540
      %v2557 = vadd.f32 %v2525, %v2541
      %v2558 = vadd.f32 %v2526, %v2542
      %v2559 = vadd.f32 %v2527, %v2543
      %v2560 = vadd.f32 %v2528, %v2544
      %v2561 = vadd.f32 %v2529, %v2545
      %v2562 = vadd.f32 %v2530, %v2546
      %v2563 = vadd.f32 %v2531, %v2547
      %v2564 = vadd.f32 %v2532, %v2548
      %v2565 = vadd.f32 %v2533, %v2549
      %v2566 = vadd.f32 %v2534, %v2550
      %v2567 = vadd.f32 %v2535, %v2551
      %v2568 = vadd.f32 %v2536, %v2552
      %v2569 = vadd.f32 %v2537, %v2553
      %v2570 = vadd.f32 %v2538, %v2554
      %v2571 = vmax.f32 %v2555, 0.0
      %v2572 = vmax.f32 %v2556, 0.0
      %v2573 = vmax.f32 %v2557, 0.0
      %v2574 = vmax.f32 %v2558, 0.0
      %v2575 = vmax.f32 %v2559, 0.0
      %v2576 = vmax.f32 %v2560, 0.0
      %v2577 = vmax.f32 %v2561, 0.0
      %v2578 = vmax.f32 %v2562, 0.0
      %v2579 = vmax.f32 %v2563, 0.0
      %v2580 = vmax.f32 %v2564, 0.0
      %v2581 = vmax.f32 %v2565, 0.0
      %v2582 = vmax.f32 %v2566, 0.0
      %v2583 = vmax.f32 %v2567, 0.0
      %v2584 = vmax.f32 %v2568, 0.0
      %v2585 = vmax.f32 %v2569, 0.0
      %v2586 = vmax.f32 %v2570, 0.0
      %2587 = vst.msk [vmem:[%s579] sm:$0xff] %vm662, %v2571
      %2588 = vst.msk [vmem:[%s579 + $0x8] sm:$0xff] %vm662, %v2572
      %2589 = vst.msk [vmem:[%s579 + $0x10] sm:$0xff] %vm662, %v2573
      %2590 = vst.msk [vmem:[%s579 + $0x18] sm:$0xff] %vm662, %v2574
      %2591 = vst.msk [vmem:[%s579 + $0x20] sm:$0xff] %vm662, %v2575
      %2592 = vst.msk [vmem:[%s579 + $0x28] sm:$0xff] %vm662, %v2576
      %2593 = vst.msk [vmem:[%s579 + $0x30] sm:$0xff] %vm662, %v2577
      %2594 = vst.msk [vmem:[%s579 + $0x38] sm:$0xff] %vm662, %v2578
      %2595 = vst.msk [vmem:[%s579 + $0x40] sm:$0xff] %vm662, %v2579
      %2596 = vst.msk [vmem:[%s579 + $0x48] sm:$0xff] %vm662, %v2580
      %2597 = vst.msk [vmem:[%s579 + $0x50] sm:$0xff] %vm662, %v2581
      %2598 = vst.msk [vmem:[%s579 + $0x58] sm:$0xff] %vm662, %v2582
      %2599 = vst.msk [vmem:[%s579 + $0x60] sm:$0xff] %vm662, %v2583
      %2600 = vst.msk [vmem:[%s579 + $0x68] sm:$0xff] %vm662, %v2584
      %2601 = vst.msk [vmem:[%s579 + $0x70] sm:$0xff] %vm662, %v2585
      %2602 = vst.msk [vmem:[%s579 + $0x78] sm:$0xff] %vm662, %v2586
      %s2603 = smul.u32 16, %s28
      %p2604 = scmp.lt.s32.totalorder %s27, 1
      %s2605 = scalar_select %p2604, %s27, 1
      %p2606 = scmp.lt.s32.totalorder %s2603, 31
      %s2607 = scalar_select %p2606, %s2603, 31
      %s2608 = smul.addr %s2605, 32
      %s2609 = sadd.s32 %s2607, %s2608
      %s2610 = smul.addr %s2609, 8
      %s2611 = scalar_lea.vmem %s12, %s2610
      // Predicated region
      $region69: #{bottleneck_forward.1} parent=67 // pred_check
        %p2612 = pneg %p344
      $region70: #{bottleneck_forward.1} parent=67 // pred_check_branch
        %2614 = sbr.rel (%p2612) target = $region72
      $region71: #{bottleneck_forward.1} parent=67 // pred_region
        %s2615 = smul.u32 16, %s28
      $region72: #{bottleneck_forward.1} parent=67 // pred_fallthru
        _
    $region68: #{bottleneck_forward.1} parent=5 // pred_fallthru
      _
    %p2616 = scmp.le.s32.totalorder 2, %s18
    // Predicated region
    $region73: #{bottleneck_forward.1} parent=5 // pred_check
      %p2617 = pneg %p2616
    $region74: #{bottleneck_forward.1} parent=5 // pred_check_branch
      %2619 = sbr.rel (%p2617) target = $region76
    $region75: #{bottleneck_forward.1} parent=5 // pred_region
      %s2620 = ssub.s32 %s18, 2
      // Predicated region
      $region77: #{bottleneck_forward.1} parent=75 // pred_check
        %p2621 = pneg %p350
      $region78: #{bottleneck_forward.1} parent=75 // pred_check_branch
        %2623 = sbr.rel (%p2621) target = $region80
      $region79: #{bottleneck_forward.1} parent=75 // pred_region
        %s2624 = smul.u32 16, %s30
        %p2625 = scmp.lt.s32.totalorder %s29, 1
        %s2626 = scalar_select %p2625, %s29, 1
        %p2627 = scmp.lt.s32.totalorder %s2624, 31
        %s2628 = scalar_select %p2627, %s2624, 31
        %s2629 = smul.addr %s2626, 32
        %s2630 = sadd.s32 %s2628, %s2629
        %s2631 = smul.addr %s2630, 8
        %s2632 = scalar_lea.vmem %s12, %s2631
      $region80: #{bottleneck_forward.1} parent=75 // pred_fallthru
        _
    $region76: #{bottleneck_forward.1} parent=5 // pred_fallthru
      _
  $region6: #{bottleneck_forward.1} parent=0 // loop_footer
    %s22 = sadd.s32 1, %s18
  $region7: #{bottleneck_forward.1} parent=0 // loop_footer_branch
    %17 = sbr.rel target = $region3
  $region8: #{bottleneck_forward.1} parent=0 // loop_exit
    _

</llo_original>
